<compile_context>
chip_gen: v7x
topology: tpu7x:2x2x1
jax: 0.10.0
libtpu: 0.0.40
codegen_flags: <defaults>
</compile_context>

<pallas_src>
import functools

import jax
import jax.numpy as jnp
from jax.experimental import pallas as pl
from jax.experimental.pallas import tpu as pltpu


# ------------------------------ helpers --------------------------------------

def _round_up(x, m):
    return (x + m - 1) // m * m


def _pick_row_tile(H, Wp, target_lanes=2048):
    """Largest divisor TH of H with TH*Wp <= target output lanes."""
    cands = [th for th in range(1, H + 1) if H % th == 0 and th * Wp <= target_lanes]
    return max(cands) if cands else 1


def _pick_cout_tile(C_out):
    for t in (256, 128):            # MXU-friendly row tiles when divisible
        if C_out % t == 0:
            return t
    return C_out


# ----------------------------- Pallas kernel ----------------------------------

def _conv_kernel(w_ref, b_ref, x_ref, o_ref, *, K, Wp, THW):
    """One (batch, C_out-tile, row-tile) grid step.

    w_ref: (K*K, TCO, C_in)  compute dtype (bf16)   -- filter taps
    b_ref: (TCO, 1)          f32                    -- bias
    x_ref: (C_in, L)         compute dtype          -- row-major flattened
                                                       (TH+2p, Wp) halo tile (+ tail pad)
    o_ref: (TCO, THW)        output dtype           -- THW = TH*Wp; cols >= W per
                                                       row are garbage, dropped later
    """
    acc = jnp.zeros(o_ref.shape, jnp.float32)
    for kh in range(K):
        for kw in range(K):
            s = kh * Wp + kw                      # static lane offset of this tap
            slab = x_ref[:, s:s + THW]            # (C_in, THW) shifted window
            acc = acc + jnp.dot(w_ref[kh * K + kw], slab,
                                preferred_element_type=jnp.float32)
    o_ref[...] = (acc + b_ref[...]).astype(o_ref.dtype)


# ------------------------------- wrapper --------------------------------------

def conv2d_pallas(x, weight, bias=None, *, compute_dtype=jnp.bfloat16,
                  row_tile=None, cout_tile=None):
    """x: (N, C_in, H, W); weight: (C_out, C_in, K, K); bias: (C_out,) or None.

    Equivalent to torch.nn.functional.conv2d(x, w, padding=K//2) + bias
    (the default up=False / down=False path of the EDM Conv2d module).
    Set compute_dtype=jnp.float32 for exact f32 operands.
    """
    N, C_in, H, W = x.shape
    C_out, C_in_w, K, K_w = weight.shape
    assert C_in_w == C_in and K_w == K
    assert K % 2 == 1, "only odd (same-padded, stride-1) kernels supported"
    if bias is None:
        bias = jnp.zeros((C_out,), x.dtype)

    p = K // 2
    Wp = W + 2 * p

    TH = row_tile if row_tile is not None else _pick_row_tile(H, Wp)
    assert H % TH == 0
    nH = H // TH
    THp = TH + 2 * p
    THW = TH * Wp                                  # output lanes per tile
    L = _round_up(THp * Wp + 2 * p, 128)           # flattened + tail-padded input tile

    TCO = cout_tile if cout_tile is not None else _pick_cout_tile(C_out)
    assert C_out % TCO == 0
    nCO = C_out // TCO

    # ---- staging (cheap; NO K^2 im2col expansion): pad + row-tile halo ----
    xp = jnp.pad(x, ((0, 0), (0, 0), (p, p), (p, p)))              # (N,C,Hp,Wp)
    if nH == 1:
        xt = xp[:, None]                                           # (N,1,C,THp,Wp)
    else:
        xt = jnp.stack([xp[:, :, t * TH: t * TH + THp, :] for t in range(nH)],
                       axis=1)                                     # (N,nH,C,THp,Wp)
    xt = xt.reshape(N, nH, C_in, THp * Wp)
    xt = jnp.pad(xt, ((0, 0), (0, 0), (0, 0), (0, L - THp * Wp)))
    xt = xt.astype(compute_dtype)

    # filter taps: (K*K, C_out, C_in); bf16 operands, f32 accumulation in-kernel
    w_r = jnp.transpose(weight, (2, 3, 0, 1)).reshape(K * K, C_out, C_in)
    w_r = w_r.astype(compute_dtype)
    b_col = bias.astype(jnp.float32).reshape(C_out, 1)

    kernel = functools.partial(_conv_kernel, K=K, Wp=Wp, THW=THW)

    cbytes = jnp.dtype(compute_dtype).itemsize
    obytes = jnp.dtype(x.dtype).itemsize
    block_bytes = (K * K * TCO * C_in * cbytes + C_in * L * cbytes
                   + TCO * THW * obytes + TCO * 4)
    # headroom for double-buffering; cap at v7x's 64 MiB physical VMEM
    vmem_limit = int(min(64 * 2 ** 20, max(32 * 2 ** 20, 3 * block_bytes)))

    out = pl.pallas_call(
        kernel,
        out_shape=jax.ShapeDtypeStruct((N, nH, C_out, THW), x.dtype),
        grid_spec=pltpu.PrefetchScalarGridSpec(
            num_scalar_prefetch=0,
            # inner axis = row tiles -> weight/bias blocks stay resident across it
            grid=(N, nCO, nH),
            in_specs=[
                pl.BlockSpec((K * K, TCO, C_in), lambda n, co, t: (0, co, 0)),
                pl.BlockSpec((TCO, 1), lambda n, co, t: (co, 0)),
                pl.BlockSpec((pl.Squeezed(), pl.Squeezed(), C_in, L),
                             lambda n, co, t: (n, t, 0, 0)),
            ],
            out_specs=pl.BlockSpec((pl.Squeezed(), pl.Squeezed(), TCO, THW),
                                   lambda n, co, t: (n, t, co, 0)),
        ),
        compiler_params=pltpu.CompilerParams(
            dimension_semantics=("parallel", "parallel", "parallel"),
            vmem_limit_bytes=vmem_limit),
        cost_estimate=pl.CostEstimate(
            flops=2 * N * C_out * C_in * K * K * H * W,
            transcendentals=0,
            bytes_accessed=int(xt.size * cbytes + w_r.size * cbytes
                               + N * nH * C_out * THW * obytes)),
    )(w_r, b_col, xt)

    # (N, nH, C_out, TH*Wp) -> drop the 2p garbage cols per row -> (N, C_out, H, W)
    out = out.reshape(N, nH, C_out, TH, Wp)[..., :W]
    out = jnp.transpose(out, (0, 2, 1, 3, 4)).reshape(N, C_out, H, W)
    return out


# ------------------------ parameter init (deterministic) ----------------------

def init_conv2d_params(key, in_channels, out_channels, kernel,
                       init_mode="kaiming_normal", init_weight=1.0,
                       init_bias=0.0, dtype=jnp.float32):
    fan_in = in_channels * kernel * kernel
    fan_out = out_channels * kernel * kernel
    kw, kb = jax.random.split(key)
    shape_w = (out_channels, in_channels, kernel, kernel)
    if init_mode == "kaiming_normal":
        w = jnp.sqrt(1.0 / fan_in) * jax.random.normal(kw, shape_w, dtype)
        b = jnp.sqrt(1.0 / fan_in) * jax.random.normal(kb, (out_channels,), dtype)
    elif init_mode == "xavier_normal":
        w = jnp.sqrt(2.0 / (fan_in + fan_out)) * jax.random.normal(kw, shape_w, dtype)
        b = jnp.sqrt(2.0 / (fan_in + fan_out)) * jax.random.normal(kb, (out_channels,), dtype)
    elif init_mode == "kaiming_uniform":
        w = jnp.sqrt(3.0 / fan_in) * jax.random.uniform(kw, shape_w, dtype, -1.0, 1.0)
        b = jnp.sqrt(3.0 / fan_in) * jax.random.uniform(kb, (out_channels,), dtype, -1.0, 1.0)
    elif init_mode == "xavier_uniform":
        w = jnp.sqrt(6.0 / (fan_in + fan_out)) * jax.random.uniform(kw, shape_w, dtype, -1.0, 1.0)
        b = jnp.sqrt(6.0 / (fan_in + fan_out)) * jax.random.uniform(kb, (out_channels,), dtype, -1.0, 1.0)
    else:
        raise ValueError(f'Invalid init mode "{init_mode}"')
    return w * init_weight, b * init_bias


# ------------------------------- reference ------------------------------------

def conv2d_ref(x, weight, bias):
    pad = weight.shape[-1] // 2
    y = jax.lax.conv_general_dilated(
        x, weight, window_strides=(1, 1),
        padding=((pad, pad), (pad, pad)),
        dimension_numbers=("NCHW", "OIHW", "NCHW"),
        precision=jax.lax.Precision.HIGHEST)
    return y + bias.reshape(1, -1, 1, 1)


# --------------------------------- main ----------------------------------------

if __name__ == "__main__":
    key = jax.random.PRNGKey(0)
    k_x, k_p = jax.random.split(key)

    N, C_in, H, W = 2, 4, 16, 16
    C_out, K = 8, 3

    x = jax.random.normal(k_x, (N, C_in, H, W), jnp.float32)
    w, b = init_conv2d_params(k_p, C_in, C_out, K, init_bias=1.0)

    out = jax.jit(conv2d_pallas)(x, w, b)
    out = jax.block_until_ready(out)

    # Reference with the same bf16 operand quantization (kernel accumulates in f32).
    ref = conv2d_ref(x.astype(jnp.bfloat16).astype(jnp.float32),
                     w.astype(jnp.bfloat16).astype(jnp.float32), b)

    assert out.shape == (N, C_out, H, W)
    max_err = jnp.max(jnp.abs(out - ref))
    assert jnp.allclose(out, ref, atol=1e-3, rtol=1e-3), (
        f"mismatch vs lax.conv reference, max err {max_err}")

    print("KERNEL_OK")
</pallas_src>

<mosaic_0001>
module attributes {stable_mosaic.version = 11 : i64} {
  func.func @_conv_kernel(%arg0: i32, %arg1: i32, %arg2: i32, %arg3: memref<9x8x4xbf16, #tpu.memory_space<vmem>>, %arg4: memref<8x1xf32, #tpu.memory_space<vmem>>, %arg5: memref<1x1x4x384xbf16, #tpu.memory_space<vmem>>, %arg6: memref<1x1x8x288xf32, #tpu.memory_space<vmem>>) attributes {dimension_semantics = [#tpu.dimension_semantics<parallel>, #tpu.dimension_semantics<parallel>, #tpu.dimension_semantics<parallel>], iteration_bounds = array<i64: 2, 1, 1>, scalar_prefetch = 0 : i64, scratch_operands = 0 : i64, tpu.core_type = #tpu.core_type<tc>, window_params = [{transform_indices = @transform_0, window_bounds = array<i64: 9, 8, 4>}, {transform_indices = @transform_1, window_bounds = array<i64: 8, 1>}, {transform_indices = @transform_2, window_bounds = array<i64: 1, 1, 4, 384>}, {transform_indices = @transform_3, window_bounds = array<i64: 1, 1, 8, 288>}]} {
    %cst = arith.constant 0.000000e+00 : f32
    %0 = vector.broadcast %cst : f32 to vector<8x288xf32>
    %c0 = arith.constant 0 : index
    %c0_0 = arith.constant 0 : index
    %c0_1 = arith.constant 0 : index
    %c0_2 = arith.constant 0 : index
    %1 = vector.load %arg5[%c0, %c0_0, %c0_1, %c0_2] : memref<1x1x4x384xbf16, #tpu.memory_space<vmem>>, vector<1x1x4x288xbf16>
    %2 = vector.shape_cast %1 : vector<1x1x4x288xbf16> to vector<4x288xbf16>
    %c0_3 = arith.constant 0 : index
    %c0_4 = arith.constant 0 : index
    %c0_5 = arith.constant 0 : index
    %3 = vector.load %arg3[%c0_3, %c0_4, %c0_5] : memref<9x8x4xbf16, #tpu.memory_space<vmem>>, vector<1x8x4xbf16>
    %4 = vector.shape_cast %3 : vector<1x8x4xbf16> to vector<8x4xbf16>
    %cst_6 = arith.constant dense<0.000000e+00> : vector<8x288xf32>
    %5 = tpu.matmul %4, %2, %cst_6 {dimension_numbers = #tpu.dot_dimension_numbers<[1], [0], [0], [1], [0, 0, 1, 1], [], []>} : vector<8x4xbf16>, vector<4x288xbf16>, vector<8x288xf32> -> vector<8x288xf32>
    %6 = arith.addf %0, %5 : vector<8x288xf32>
    %c0_7 = arith.constant 0 : index
    %c0_8 = arith.constant 0 : index
    %c0_9 = arith.constant 0 : index
    %c1 = arith.constant 1 : index
    %7 = vector.load %arg5[%c0_7, %c0_8, %c0_9, %c1] : memref<1x1x4x384xbf16, #tpu.memory_space<vmem>>, vector<1x1x4x288xbf16>
    %8 = vector.shape_cast %7 : vector<1x1x4x288xbf16> to vector<4x288xbf16>
    %c1_10 = arith.constant 1 : index
    %c0_11 = arith.constant 0 : index
    %c0_12 = arith.constant 0 : index
    %9 = vector.load %arg3[%c1_10, %c0_11, %c0_12] : memref<9x8x4xbf16, #tpu.memory_space<vmem>>, vector<1x8x4xbf16>
    %10 = vector.shape_cast %9 : vector<1x8x4xbf16> to vector<8x4xbf16>
    %cst_13 = arith.constant dense<0.000000e+00> : vector<8x288xf32>
    %11 = tpu.matmul %10, %8, %cst_13 {dimension_numbers = #tpu.dot_dimension_numbers<[1], [0], [0], [1], [0, 0, 1, 1], [], []>} : vector<8x4xbf16>, vector<4x288xbf16>, vector<8x288xf32> -> vector<8x288xf32>
    %12 = arith.addf %6, %11 : vector<8x288xf32>
    %c0_14 = arith.constant 0 : index
    %c0_15 = arith.constant 0 : index
    %c0_16 = arith.constant 0 : index
    %c2 = arith.constant 2 : index
    %13 = vector.load %arg5[%c0_14, %c0_15, %c0_16, %c2] : memref<1x1x4x384xbf16, #tpu.memory_space<vmem>>, vector<1x1x4x288xbf16>
    %14 = vector.shape_cast %13 : vector<1x1x4x288xbf16> to vector<4x288xbf16>
    %c2_17 = arith.constant 2 : index
    %c0_18 = arith.constant 0 : index
    %c0_19 = arith.constant 0 : index
    %15 = vector.load %arg3[%c2_17, %c0_18, %c0_19] : memref<9x8x4xbf16, #tpu.memory_space<vmem>>, vector<1x8x4xbf16>
    %16 = vector.shape_cast %15 : vector<1x8x4xbf16> to vector<8x4xbf16>
    %cst_20 = arith.constant dense<0.000000e+00> : vector<8x288xf32>
    %17 = tpu.matmul %16, %14, %cst_20 {dimension_numbers = #tpu.dot_dimension_numbers<[1], [0], [0], [1], [0, 0, 1, 1], [], []>} : vector<8x4xbf16>, vector<4x288xbf16>, vector<8x288xf32> -> vector<8x288xf32>
    %18 = arith.addf %12, %17 : vector<8x288xf32>
    %c0_21 = arith.constant 0 : index
    %c0_22 = arith.constant 0 : index
    %c0_23 = arith.constant 0 : index
    %c18 = arith.constant 18 : index
    %19 = vector.load %arg5[%c0_21, %c0_22, %c0_23, %c18] : memref<1x1x4x384xbf16, #tpu.memory_space<vmem>>, vector<1x1x4x288xbf16>
    %20 = vector.shape_cast %19 : vector<1x1x4x288xbf16> to vector<4x288xbf16>
    %c3 = arith.constant 3 : index
    %c0_24 = arith.constant 0 : index
    %c0_25 = arith.constant 0 : index
    %21 = vector.load %arg3[%c3, %c0_24, %c0_25] : memref<9x8x4xbf16, #tpu.memory_space<vmem>>, vector<1x8x4xbf16>
    %22 = vector.shape_cast %21 : vector<1x8x4xbf16> to vector<8x4xbf16>
    %cst_26 = arith.constant dense<0.000000e+00> : vector<8x288xf32>
    %23 = tpu.matmul %22, %20, %cst_26 {dimension_numbers = #tpu.dot_dimension_numbers<[1], [0], [0], [1], [0, 0, 1, 1], [], []>} : vector<8x4xbf16>, vector<4x288xbf16>, vector<8x288xf32> -> vector<8x288xf32>
    %24 = arith.addf %18, %23 : vector<8x288xf32>
    %c0_27 = arith.constant 0 : index
    %c0_28 = arith.constant 0 : index
    %c0_29 = arith.constant 0 : index
    %c19 = arith.constant 19 : index
    %25 = vector.load %arg5[%c0_27, %c0_28, %c0_29, %c19] : memref<1x1x4x384xbf16, #tpu.memory_space<vmem>>, vector<1x1x4x288xbf16>
    %26 = vector.shape_cast %25 : vector<1x1x4x288xbf16> to vector<4x288xbf16>
    %c4 = arith.constant 4 : index
    %c0_30 = arith.constant 0 : index
    %c0_31 = arith.constant 0 : index
    %27 = vector.load %arg3[%c4, %c0_30, %c0_31] : memref<9x8x4xbf16, #tpu.memory_space<vmem>>, vector<1x8x4xbf16>
    %28 = vector.shape_cast %27 : vector<1x8x4xbf16> to vector<8x4xbf16>
    %cst_32 = arith.constant dense<0.000000e+00> : vector<8x288xf32>
    %29 = tpu.matmul %28, %26, %cst_32 {dimension_numbers = #tpu.dot_dimension_numbers<[1], [0], [0], [1], [0, 0, 1, 1], [], []>} : vector<8x4xbf16>, vector<4x288xbf16>, vector<8x288xf32> -> vector<8x288xf32>
    %30 = arith.addf %24, %29 : vector<8x288xf32>
    %c0_33 = arith.constant 0 : index
    %c0_34 = arith.constant 0 : index
    %c0_35 = arith.constant 0 : index
    %c20 = arith.constant 20 : index
    %31 = vector.load %arg5[%c0_33, %c0_34, %c0_35, %c20] : memref<1x1x4x384xbf16, #tpu.memory_space<vmem>>, vector<1x1x4x288xbf16>
    %32 = vector.shape_cast %31 : vector<1x1x4x288xbf16> to vector<4x288xbf16>
    %c5 = arith.constant 5 : index
    %c0_36 = arith.constant 0 : index
    %c0_37 = arith.constant 0 : index
    %33 = vector.load %arg3[%c5, %c0_36, %c0_37] : memref<9x8x4xbf16, #tpu.memory_space<vmem>>, vector<1x8x4xbf16>
    %34 = vector.shape_cast %33 : vector<1x8x4xbf16> to vector<8x4xbf16>
    %cst_38 = arith.constant dense<0.000000e+00> : vector<8x288xf32>
    %35 = tpu.matmul %34, %32, %cst_38 {dimension_numbers = #tpu.dot_dimension_numbers<[1], [0], [0], [1], [0, 0, 1, 1], [], []>} : vector<8x4xbf16>, vector<4x288xbf16>, vector<8x288xf32> -> vector<8x288xf32>
    %36 = arith.addf %30, %35 : vector<8x288xf32>
    %c0_39 = arith.constant 0 : index
    %c0_40 = arith.constant 0 : index
    %c0_41 = arith.constant 0 : index
    %c36 = arith.constant 36 : index
    %37 = vector.load %arg5[%c0_39, %c0_40, %c0_41, %c36] : memref<1x1x4x384xbf16, #tpu.memory_space<vmem>>, vector<1x1x4x288xbf16>
    %38 = vector.shape_cast %37 : vector<1x1x4x288xbf16> to vector<4x288xbf16>
    %c6 = arith.constant 6 : index
    %c0_42 = arith.constant 0 : index
    %c0_43 = arith.constant 0 : index
    %39 = vector.load %arg3[%c6, %c0_42, %c0_43] : memref<9x8x4xbf16, #tpu.memory_space<vmem>>, vector<1x8x4xbf16>
    %40 = vector.shape_cast %39 : vector<1x8x4xbf16> to vector<8x4xbf16>
    %cst_44 = arith.constant dense<0.000000e+00> : vector<8x288xf32>
    %41 = tpu.matmul %40, %38, %cst_44 {dimension_numbers = #tpu.dot_dimension_numbers<[1], [0], [0], [1], [0, 0, 1, 1], [], []>} : vector<8x4xbf16>, vector<4x288xbf16>, vector<8x288xf32> -> vector<8x288xf32>
    %42 = arith.addf %36, %41 : vector<8x288xf32>
    %c0_45 = arith.constant 0 : index
    %c0_46 = arith.constant 0 : index
    %c0_47 = arith.constant 0 : index
    %c37 = arith.constant 37 : index
    %43 = vector.load %arg5[%c0_45, %c0_46, %c0_47, %c37] : memref<1x1x4x384xbf16, #tpu.memory_space<vmem>>, vector<1x1x4x288xbf16>
    %44 = vector.shape_cast %43 : vector<1x1x4x288xbf16> to vector<4x288xbf16>
    %c7 = arith.constant 7 : index
    %c0_48 = arith.constant 0 : index
    %c0_49 = arith.constant 0 : index
    %45 = vector.load %arg3[%c7, %c0_48, %c0_49] : memref<9x8x4xbf16, #tpu.memory_space<vmem>>, vector<1x8x4xbf16>
    %46 = vector.shape_cast %45 : vector<1x8x4xbf16> to vector<8x4xbf16>
    %cst_50 = arith.constant dense<0.000000e+00> : vector<8x288xf32>
    %47 = tpu.matmul %46, %44, %cst_50 {dimension_numbers = #tpu.dot_dimension_numbers<[1], [0], [0], [1], [0, 0, 1, 1], [], []>} : vector<8x4xbf16>, vector<4x288xbf16>, vector<8x288xf32> -> vector<8x288xf32>
    %48 = arith.addf %42, %47 : vector<8x288xf32>
    %c0_51 = arith.constant 0 : index
    %c0_52 = arith.constant 0 : index
    %c0_53 = arith.constant 0 : index
    %c38 = arith.constant 38 : index
    %49 = vector.load %arg5[%c0_51, %c0_52, %c0_53, %c38] : memref<1x1x4x384xbf16, #tpu.memory_space<vmem>>, vector<1x1x4x288xbf16>
    %50 = vector.shape_cast %49 : vector<1x1x4x288xbf16> to vector<4x288xbf16>
    %c8 = arith.constant 8 : index
    %c0_54 = arith.constant 0 : index
    %c0_55 = arith.constant 0 : index
    %51 = vector.load %arg3[%c8, %c0_54, %c0_55] : memref<9x8x4xbf16, #tpu.memory_space<vmem>>, vector<1x8x4xbf16>
    %52 = vector.shape_cast %51 : vector<1x8x4xbf16> to vector<8x4xbf16>
    %cst_56 = arith.constant dense<0.000000e+00> : vector<8x288xf32>
    %53 = tpu.matmul %52, %50, %cst_56 {dimension_numbers = #tpu.dot_dimension_numbers<[1], [0], [0], [1], [0, 0, 1, 1], [], []>} : vector<8x4xbf16>, vector<4x288xbf16>, vector<8x288xf32> -> vector<8x288xf32>
    %54 = arith.addf %48, %53 : vector<8x288xf32>
    %c0_57 = arith.constant 0 : index
    %c0_58 = arith.constant 0 : index
    %55 = vector.load %arg4[%c0_57, %c0_58] : memref<8x1xf32, #tpu.memory_space<vmem>>, vector<8x1xf32>
    %56 = vector.broadcast %55 : vector<8x1xf32> to vector<8x288xf32>
    %57 = arith.addf %54, %56 : vector<8x288xf32>
    %c0_59 = arith.constant 0 : index
    %c0_60 = arith.constant 0 : index
    %c0_61 = arith.constant 0 : index
    %c0_62 = arith.constant 0 : index
    %58 = vector.load %arg6[%c0_59, %c0_60, %c0_61, %c0_62] : memref<1x1x8x288xf32, #tpu.memory_space<vmem>>, vector<1x1x8x288xf32>
    %59 = vector.shape_cast %58 : vector<1x1x8x288xf32> to vector<8x288xf32>
    %60 = vector.shape_cast %57 : vector<8x288xf32> to vector<1x1x8x288xf32>
    tpu.vector_store %arg6[%c0_59, %c0_60, %c0_61, %c0_62], %60 {strides = array<i32>} : memref<1x1x8x288xf32, #tpu.memory_space<vmem>>, vector<1x1x8x288xf32>,
    return
  }
  func.func @transform_0(%arg0: i32, %arg1: i32, %arg2: i32) -> (i32, i32, i32) {
    %c0_i32 = arith.constant 0 : i32
    %c0_i32_0 = arith.constant 0 : i32
    %c0_i32_1 = arith.constant 0 : i32
    return %c0_i32, %arg1, %c0_i32_0 : i32, i32, i32
  }
  func.func @transform_1(%arg0: i32, %arg1: i32, %arg2: i32) -> (i32, i32) {
    %c0_i32 = arith.constant 0 : i32
    %c0_i32_0 = arith.constant 0 : i32
    return %arg1, %c0_i32 : i32, i32
  }
  func.func @transform_2(%arg0: i32, %arg1: i32, %arg2: i32) -> (i32, i32, i32, i32) {
    %c0_i32 = arith.constant 0 : i32
    %c0_i32_0 = arith.constant 0 : i32
    %c0_i32_1 = arith.constant 0 : i32
    return %arg0, %arg2, %c0_i32, %c0_i32_0 : i32, i32, i32, i32
  }
  func.func @transform_3(%arg0: i32, %arg1: i32, %arg2: i32) -> (i32, i32, i32, i32) {
    %c0_i32 = arith.constant 0 : i32
    %c0_i32_0 = arith.constant 0 : i32
    return %arg0, %arg2, %arg1, %c0_i32 : i32, i32, i32, i32
  }
}

</mosaic_0001>

<llo_original>
// kernel: conv2d_pallas.1
$region0: #{conv2d_pallas.1}
  #allocation0 [shape = 'u32[]', space=smem, size = 0x4, offset = 0x4, fixed_abs, tag = 'smem constant byte address 0x4 - core index']
  #allocation1 [shape = 'u32[144,128]{1,0:T(1,128)}', space=vmem, size = 0x12000, scoped, tag = 'internal scratch']
  %s0 = inlined_call_operand.vmem [shape: bf16[9,8,4], index: 0, kind: input, shape index: {}]
  %s1 = inlined_call_operand.vmem [shape: f32[8,1], index: 1, kind: input, shape index: {}]
  %s2 = inlined_call_operand.vmem [shape: bf16[2,1,4,384], index: 2, kind: input, shape index: {}]
  %s3 = inlined_call_operand.vmem [shape: f32[2,1,8,288], index: 3, kind: output, shape index: {}]
  %s4 = sld [smem:[#allocation0]]
  $region45: #{conv2d_pallas.1} parent=0
    _
  %s6 = ssub.s32 1, %s4
  %s7 = scalar_select 0, %s6, %s4
  loop: start=0, step=1, limit=4
  $region2: #{conv2d_pallas.1} parent=0 // loop_pre_header
    _
  $region3: #{conv2d_pallas.1} parent=0 // loop_header
    %s9 = sphi 0, %s13
    %p10 = scmp.ge.s32.totalorder %s9, 4
    %s16 = sphi 0, %s35
    %s17 = sphi 0, %s31
    %s18 = sphi 0, %s27
    %s19 = sphi 0, %s16
    %s20 = sphi 0, %s17
    %s21 = sphi 0, %s18
    %s22 = sphi 0, %s19
    %s23 = sphi 0, %s20
    %s24 = sphi 0, %s21
    %s38 = sphi 0, %s40
    %s41 = sphi 0, %s38
    %s42 = sphi 0, %s41
    %s58 = sphi 0, %s42
    %s64 = sphi 0, %s66
    %s67 = sphi 0, %s64
    %s68 = sphi 0, %s67
    %s84 = sphi 0, %s68
    %s92 = sphi 0, %s94
    %s95 = sphi 0, %s92
    %s96 = sphi 0, %s95
    %s112 = sphi 0, %s96
    %s122 = sphi 0, %s124
    %s125 = sphi 0, %s122
    %s126 = sphi 0, %s125
    %s142 = sphi 0, %s126
  $region4: #{conv2d_pallas.1} parent=0 // loop_header_branch
    %12 = sbr.rel (%p10) target = $region8
  $region5: #{conv2d_pallas.1} parent=0 // loop_body
    %s14 = ssub.s32 %s9, 1
    %s15 = ssub.s32 %s9, 2
    %s25 = sadd.s32 1, %s18
    %p26 = scmp.ge.s32.totalorder %s25, 1
    %s27 = scalar_select %p26, 0, %s25
    %s28 = sadd.s32 1, %s17
    %s29 = scalar_select %p26, %s28, %s17
    %p30 = scmp.ge.s32.totalorder %s29, 1
    %s31 = scalar_select %p30, 0, %s29
    %s32 = sadd.s32 1, %s16
    %s33 = scalar_select %p30, %s32, %s16
    %p34 = scmp.ge.s32.totalorder %s33, 2
    %s35 = scalar_select %p34, 0, %s33
    %s36 = ssub.s32 %s17, %s31
    %p37 = scmp.eq.s32.totalorder %s36, 0
    %s39 = sadd.s32 %s38, 1
    %s40 = scalar_select %p37, %s38, %s39
    %p43 = pneg %p37
    %p44 = scmp.eq.s32.totalorder %s9, 1
    %p45 = por %p43, %p44
    %p46 = scmp.ne.s32.totalorder %s38, %s41
    %p47 = scmp.eq.s32.totalorder %s9, 0
    %p48 = por %p46, %p47
    %p49 = scmp.ne.s32.totalorder %s38, %s41
    %p50 = scmp.eq.s32.totalorder %s14, 1
    %p51 = por %p49, %p50
    %p52 = scmp.ne.s32.totalorder %s41, %s42
    %p53 = scmp.eq.s32.totalorder %s14, 0
    %p54 = por %p52, %p53
    %p55 = scmp.ne.s32.totalorder %s41, %s42
    %p56 = scmp.eq.s32.totalorder %s15, 1
    %p57 = por %p55, %p56
    %p59 = scmp.ne.s32.totalorder %s42, %s58
    %p60 = scmp.eq.s32.totalorder %s15, 0
    %p61 = por %p59, %p60
    %s62 = ssub.s32 %s17, %s31
    %p63 = scmp.eq.s32.totalorder %s62, 0
    %s65 = sadd.s32 %s64, 1
    %s66 = scalar_select %p63, %s64, %s65
    %p69 = pneg %p63
    %p70 = scmp.eq.s32.totalorder %s9, 1
    %p71 = por %p69, %p70
    %p72 = scmp.ne.s32.totalorder %s64, %s67
    %p73 = scmp.eq.s32.totalorder %s9, 0
    %p74 = por %p72, %p73
    %p75 = scmp.ne.s32.totalorder %s64, %s67
    %p76 = scmp.eq.s32.totalorder %s14, 1
    %p77 = por %p75, %p76
    %p78 = scmp.ne.s32.totalorder %s67, %s68
    %p79 = scmp.eq.s32.totalorder %s14, 0
    %p80 = por %p78, %p79
    %p81 = scmp.ne.s32.totalorder %s67, %s68
    %p82 = scmp.eq.s32.totalorder %s15, 1
    %p83 = por %p81, %p82
    %p85 = scmp.ne.s32.totalorder %s68, %s84
    %p86 = scmp.eq.s32.totalorder %s15, 0
    %p87 = por %p85, %p86
    %s88 = ssub.s32 %s16, %s35
    %s89 = ssub.s32 %s18, %s27
    %s90 = sor.u32 %s88, %s89
    %p91 = scmp.eq.s32.totalorder %s90, 0
    %s93 = sadd.s32 %s92, 1
    %s94 = scalar_select %p91, %s92, %s93
    %p97 = pneg %p91
    %p98 = scmp.eq.s32.totalorder %s9, 1
    %p99 = por %p97, %p98
    %p100 = scmp.ne.s32.totalorder %s92, %s95
    %p101 = scmp.eq.s32.totalorder %s9, 0
    %p102 = por %p100, %p101
    %p103 = scmp.ne.s32.totalorder %s92, %s95
    %p104 = scmp.eq.s32.totalorder %s14, 1
    %p105 = por %p103, %p104
    %p106 = scmp.ne.s32.totalorder %s95, %s96
    %p107 = scmp.eq.s32.totalorder %s14, 0
    %p108 = por %p106, %p107
    %p109 = scmp.ne.s32.totalorder %s95, %s96
    %p110 = scmp.eq.s32.totalorder %s15, 1
    %p111 = por %p109, %p110
    %p113 = scmp.ne.s32.totalorder %s96, %s112
    %p114 = scmp.eq.s32.totalorder %s15, 0
    %p115 = por %p113, %p114
    %s116 = ssub.s32 %s16, %s35
    %s117 = ssub.s32 %s18, %s27
    %s118 = sor.u32 %s116, %s117
    %s119 = ssub.s32 %s17, %s31
    %s120 = sor.u32 %s118, %s119
    %p121 = scmp.eq.s32.totalorder %s120, 0
    %s123 = sadd.s32 %s122, 1
    %s124 = scalar_select %p121, %s122, %s123
    %p127 = pneg %p121
    %p128 = scmp.eq.s32.totalorder %s9, 1
    %p129 = por %p127, %p128
    %p130 = scmp.ne.s32.totalorder %s122, %s125
    %p131 = scmp.eq.s32.totalorder %s9, 0
    %p132 = por %p130, %p131
    %p133 = scmp.ne.s32.totalorder %s122, %s125
    %p134 = scmp.eq.s32.totalorder %s14, 1
    %p135 = por %p133, %p134
    %p136 = scmp.ne.s32.totalorder %s125, %s126
    %p137 = scmp.eq.s32.totalorder %s14, 0
    %p138 = por %p136, %p137
    %p139 = scmp.ne.s32.totalorder %s125, %s126
    %p140 = scmp.eq.s32.totalorder %s15, 1
    %p141 = por %p139, %p140
    %p143 = scmp.ne.s32.totalorder %s126, %s142
    %p144 = scmp.eq.s32.totalorder %s15, 0
    %p145 = por %p143, %p144
    %p146 = scmp.le.s32.totalorder 1, %s9
    %p147 = scmp.lt.s32.totalorder %s9, 3
    %p148 = pnand %p146, %p147
    %p149 = pneg %p148
    // Predicated region
    $region9: #{conv2d_pallas.1} parent=5 // pred_check
      _
    $region10: #{conv2d_pallas.1} parent=5 // pred_check_branch
      %151 = sbr.rel (%p148) target = $region12
    $region11: #{conv2d_pallas.1} parent=5 // pred_region
      %s152 = ssub.s32 %s9, 1
      // Predicated region
      $region13: #{conv2d_pallas.1} parent=11 // pred_check
        %p153 = pneg %p54
      $region14: #{conv2d_pallas.1} parent=11 // pred_check_branch
        %155 = sbr.rel (%p153) target = $region16
      $region15: #{conv2d_pallas.1} parent=11 // pred_region
        %p156 = scmp.lt.s32.totalorder %s20, 0
        %s157 = scalar_select %p156, %s20, 0
        %s158 = smul.addr %s157, 4
        %s159 = scalar_lea.vmem %s0, %s158
      $region16: #{conv2d_pallas.1} parent=11 // pred_fallthru
        _
      // Predicated region
      $region17: #{conv2d_pallas.1} parent=11 // pred_check
        %p160 = pneg %p80
      $region18: #{conv2d_pallas.1} parent=11 // pred_check_branch
        %162 = sbr.rel (%p160) target = $region20
      $region19: #{conv2d_pallas.1} parent=11 // pred_region
        %p163 = scmp.lt.s32.totalorder %s20, 0
        %s164 = scalar_select %p163, %s20, 0
        %s165 = smul.addr %s164, 8
        %s166 = scalar_lea.vmem %s1, %s165
      $region20: #{conv2d_pallas.1} parent=11 // pred_fallthru
        _
    $region12: #{conv2d_pallas.1} parent=5 // pred_fallthru
      _
    %p167 = scmp.lt.s32.totalorder %s9, 2
    // Predicated region
    $region21: #{conv2d_pallas.1} parent=5 // pred_check
      %p168 = pneg %p167
    $region22: #{conv2d_pallas.1} parent=5 // pred_check_branch
      %170 = sbr.rel (%p168) target = $region24
    $region23: #{conv2d_pallas.1} parent=5 // pred_region
      // Predicated region
      $region25: #{conv2d_pallas.1} parent=23 // pred_check
        %p171 = pneg %p102
      $region26: #{conv2d_pallas.1} parent=23 // pred_check_branch
        %173 = sbr.rel (%p171) target = $region28
      $region27: #{conv2d_pallas.1} parent=23 // pred_region
        %p174 = scmp.lt.s32.totalorder %s16, 1
        %s175 = scalar_select %p174, %s16, 1
        %p176 = scmp.lt.s32.totalorder %s18, 0
        %s177 = scalar_select %p176, %s18, 0
        %s178 = smul.addr %s177, 3
        %s179 = smul.addr %s175, 3
        %s180 = sadd.s32 %s178, %s179
        %s181 = smul.addr %s180, 2
        %s182 = scalar_lea.vmem %s2, %s181
      $region28: #{conv2d_pallas.1} parent=23 // pred_fallthru
        _
    $region24: #{conv2d_pallas.1} parent=5 // pred_fallthru
      _
    %p183 = scmp.le.s32.totalorder 1, %s9
    %p184 = scmp.lt.s32.totalorder %s9, 3
    %p185 = pnand %p183, %p184
    %p186 = pneg %p185
    // Predicated region
    $region29: #{conv2d_pallas.1} parent=5 // pred_check
      _
    $region30: #{conv2d_pallas.1} parent=5 // pred_check_branch
      %188 = sbr.rel (%p185) target = $region32
    $region31: #{conv2d_pallas.1} parent=5 // pred_region
      %s189 = ssub.s32 %s9, 1
      %p190 = scmp.lt.s32.totalorder %s20, 0
      %s191 = scalar_select %p190, %s20, 0
      %s192 = smul.addr %s191, 4
      %s193 = scalar_lea.vmem %s0, %s192
      %p194 = pneg %p54
      %p195 = pneg %p51
      %p196 = scmp.lt.s32.totalorder %s20, 0
      %s197 = scalar_select %p196, %s20, 0
      %s198 = smul.addr %s197, 8
      %s199 = scalar_lea.vmem %s1, %s198
      %p200 = pneg %p80
      %p201 = pneg %p77
      %p202 = scmp.lt.s32.totalorder %s19, 1
      %s203 = scalar_select %p202, %s19, 1
      %p204 = scmp.lt.s32.totalorder %s21, 0
      %s205 = scalar_select %p204, %s21, 0
      %s206 = smul.addr %s205, 3
      %s207 = smul.addr %s203, 3
      %s208 = sadd.s32 %s206, %s207
      %s209 = smul.addr %s208, 2
      %s210 = scalar_lea.vmem %s2, %s209
      %p211 = pneg %p108
      %p212 = pneg %p105
      %p213 = pneg %p138
      %p214 = pneg %p135
      %p215 = scmp.lt.s32.totalorder %s19, 1
      %s216 = scalar_select %p215, %s19, 1
      %p217 = scmp.lt.s32.totalorder %s21, 0
      %s218 = scalar_select %p217, %s21, 0
      %p219 = scmp.lt.s32.totalorder %s20, 0
      %s220 = scalar_select %p219, %s20, 0
      %s221 = smul.addr %s220, 3
      %s222 = smul.addr %s218, 3
      %s223 = sadd.s32 %s221, %s222
      %s224 = smul.addr %s216, 3
      %s225 = sadd.s32 %s223, %s224
      %s226 = smul.addr %s225, 8
      %s227 = scalar_lea.vmem %s3, %s226
      %p228 = scmp.lt.s32.totalorder %s20, 0
      %s229 = scalar_select %p228, %s20, 0
      %s230 = smul.addr %s229, 4
      %s231 = scalar_lea.vmem %s0, %s230
      %p232 = scmp.lt.s32.totalorder %s20, 0
      %s233 = scalar_select %p232, %s20, 0
      %s234 = smul.addr %s233, 8
      %s235 = scalar_lea.vmem %s1, %s234
      %p236 = scmp.lt.s32.totalorder %s19, 1
      %s237 = scalar_select %p236, %s19, 1
      %p238 = scmp.lt.s32.totalorder %s21, 0
      %s239 = scalar_select %p238, %s21, 0
      %s240 = smul.addr %s239, 3
      %s241 = smul.addr %s237, 3
      %s242 = sadd.s32 %s240, %s241
      %s243 = smul.addr %s242, 2
      %s244 = scalar_lea.vmem %s2, %s243
      %p245 = scmp.lt.s32.totalorder %s19, 1
      %s246 = scalar_select %p245, %s19, 1
      %p247 = scmp.lt.s32.totalorder %s21, 0
      %s248 = scalar_select %p247, %s21, 0
      %p249 = scmp.lt.s32.totalorder %s20, 0
      %s250 = scalar_select %p249, %s20, 0
      %s251 = smul.addr %s250, 3
      %s252 = smul.addr %s248, 3
      %s253 = sadd.s32 %s251, %s252
      %s254 = smul.addr %s246, 3
      %s255 = sadd.s32 %s253, %s254
      %s256 = smul.addr %s255, 8
      %s257 = scalar_lea.vmem %s3, %s256
      %v259 = vld [vmem:[%s244] sm:$0x3f]
      %v260 = vld [vmem:[%s231] sm:$0xf]
      %s261 = scalar_lea.vmem %s231, 4
      %v262 = vld [vmem:[%s261] sm:$0xf]
      %v264 = vcombine.high %v259, %v259
      %v266 = vunpack.c.l.s4 1983009808
      %v267 = vunpack.c.0.s8 %v266
      %v268 = vlaneseq
      %v269 = vshrl.u32 %v268, 7
      %v270 = vsub.s32 %v267, %v269
      %v271 = vrot.slane %v259, %v270
      %v273 = vunpack.c.l.s4 1983009808
      %v274 = vunpack.c.0.s8 %v273
      %v275 = vlaneseq
      %v276 = vshrl.u32 %v275, 7
      %v277 = vsub.s32 %v274, %v276
      %v278 = vrot.slane %v264, %v277
      %v279 = vcombine.high %v271, %v271
      %280 = vrot.lane.b32.xlu0 %v271, 127
      %v281 = vpop.permute.xlu0 %280
      %282 = vrot.lane.b32.xlu0 %v279, 127
      %v283 = vpop.permute.xlu0 %282
      %284 = vrot.lane.b32.xlu0 %v278, 127
      %v285 = vpop.permute.xlu0 %284
      %vm286 = vcmask 1039360
      %v287 = vsel %vm286, %v281, %v283
      %v288 = vsel %vm286, %v283, %v285
      %vm289 = vcmask 31744
      %v291 = vsel %vm289, %v262, 0
      %vm293 = vcmask 1041408
      %v295 = vsel %vm293, %v287, 0
      %v298 = vsel %vm293, %v288, 0
      %v301 = vsel %vm293, %v285, 0
      %303 = vmatprep.subr.bf16.mxu0 %v298
      %304 = vmatpush1.bf16.msra.mxu0 %v295
      %305 = vmatprep.subr.bf16.mxu0 0
      %306 = vmatpush1.bf16.msra.mxu0 0
      %307 = vmatprep.subr.bf16.mxu0 0
      %308 = vmatpush1.bf16.msra.mxu0 0
      %309 = vmatprep.subr.bf16.mxu0 0
      %310 = vmatpush1.bf16.msra.mxu0 0
      %311 = vmatprep.subr.bf16.mxu0 0
      %312 = vmatpush1.bf16.msra.mxu0 0
      %313 = vmatprep.subr.bf16.mxu0 0
      %314 = vmatpush1.bf16.msra.mxu0 0
      %315 = vmatprep.subr.bf16.mxu0 0
      %316 = vmatpush1.bf16.msra.mxu0 0
      %317 = vmatprep.subr.bf16.mxu0 0
      %318 = vmatpush1.bf16.msra.mxu0 0
      %319 = vmatprep.subr.bf16.mxu0 0
      %320 = vmatpush1.bf16.msra.mxu0 0
      %321 = vmatprep.subr.bf16.mxu0 0
      %322 = vmatpush1.bf16.msra.mxu0 0
      %323 = vmatprep.subr.bf16.mxu0 0
      %324 = vmatpush1.bf16.msra.mxu0 0
      %325 = vmatprep.subr.bf16.mxu0 0
      %326 = vmatpush1.bf16.msra.mxu0 0
      %327 = vmatprep.subr.bf16.mxu0 0
      %328 = vmatpush1.bf16.msra.mxu0 0
      %329 = vmatprep.subr.bf16.mxu0 0
      %330 = vmatpush1.bf16.msra.mxu0 0
      %331 = vmatprep.subr.bf16.mxu0 0
      %332 = vmatpush1.bf16.msra.mxu0 0
      %333 = vmatprep.subr.bf16.mxu0 0
      %334 = vmatpush1.bf16.msra.mxu0 0
      %335 = vmatprep.mubr.bf16.mxu0 0
      %336 = vmatmul.mubr.bf16.gmra.mrb[0].mxu0 %v291
      %v337 = vpop.f32.mrb[0].mxu0
      %v338 = vadd.f32 0.0, %v337
      %v339 = vpop.f32.mrb[0].mxu0
      %v340 = vadd.f32 0.0, %v339
      %v341 = vpop.f32.mrb[0].mxu0
      %v342 = vpop.f32.mrb[0].mxu0
      %343 = vdwg.mxu0
      %344 = vmatprep.subr.bf16.mxu0 0
      %345 = vmatpush1.bf16.msra.mxu0 %v301
      %346 = vmatprep.subr.bf16.mxu0 0
      %347 = vmatpush1.bf16.msra.mxu0 0
      %348 = vmatprep.subr.bf16.mxu0 0
      %349 = vmatpush1.bf16.msra.mxu0 0
      %350 = vmatprep.subr.bf16.mxu0 0
      %351 = vmatpush1.bf16.msra.mxu0 0
      %352 = vmatprep.subr.bf16.mxu0 0
      %353 = vmatpush1.bf16.msra.mxu0 0
      %354 = vmatprep.subr.bf16.mxu0 0
      %355 = vmatpush1.bf16.msra.mxu0 0
      %356 = vmatprep.subr.bf16.mxu0 0
      %357 = vmatpush1.bf16.msra.mxu0 0
      %358 = vmatprep.subr.bf16.mxu0 0
      %359 = vmatpush1.bf16.msra.mxu0 0
      %360 = vmatprep.subr.bf16.mxu0 0
      %361 = vmatpush1.bf16.msra.mxu0 0
      %362 = vmatprep.subr.bf16.mxu0 0
      %363 = vmatpush1.bf16.msra.mxu0 0
      %364 = vmatprep.subr.bf16.mxu0 0
      %365 = vmatpush1.bf16.msra.mxu0 0
      %366 = vmatprep.subr.bf16.mxu0 0
      %367 = vmatpush1.bf16.msra.mxu0 0
      %368 = vmatprep.subr.bf16.mxu0 0
      %369 = vmatpush1.bf16.msra.mxu0 0
      %370 = vmatprep.subr.bf16.mxu0 0
      %371 = vmatpush1.bf16.msra.mxu0 0
      %372 = vmatprep.subr.bf16.mxu0 0
      %373 = vmatpush1.bf16.msra.mxu0 0
      %374 = vmatprep.subr.bf16.mxu0 0
      %375 = vmatpush1.bf16.msra.mxu0 0
      %376 = vmatprep.mubr.bf16.mxu0 0
      %377 = vmatmul.mubr.bf16.gmra.mrb[0].mxu0 %v291
      %v378 = vpop.f32.mrb[0].mxu0
      %v379 = vadd.f32 0.0, %v378
      %v380 = vpop.f32.mrb[0].mxu0
      %v381 = vpop.f32.mrb[0].mxu0
      %v382 = vpop.f32.mrb[0].mxu0
      %383 = vdwg.mxu0
      %v385 = vsel %vm289, %v260, 0
      %v388 = vsel %vm293, %v271, 0
      %v391 = vsel %vm293, %v279, 0
      %v394 = vsel %vm293, %v278, 0
      %396 = vmatprep.subr.bf16.mxu0 %v391
      %397 = vmatpush1.bf16.msra.mxu0 %v388
      %398 = vmatprep.subr.bf16.mxu0 0
      %399 = vmatpush1.bf16.msra.mxu0 0
      %400 = vmatprep.subr.bf16.mxu0 0
      %401 = vmatpush1.bf16.msra.mxu0 0
      %402 = vmatprep.subr.bf16.mxu0 0
      %403 = vmatpush1.bf16.msra.mxu0 0
      %404 = vmatprep.subr.bf16.mxu0 0
      %405 = vmatpush1.bf16.msra.mxu0 0
      %406 = vmatprep.subr.bf16.mxu0 0
      %407 = vmatpush1.bf16.msra.mxu0 0
      %408 = vmatprep.subr.bf16.mxu0 0
      %409 = vmatpush1.bf16.msra.mxu0 0
      %410 = vmatprep.subr.bf16.mxu0 0
      %411 = vmatpush1.bf16.msra.mxu0 0
      %412 = vmatprep.subr.bf16.mxu0 0
      %413 = vmatpush1.bf16.msra.mxu0 0
      %414 = vmatprep.subr.bf16.mxu0 0
      %415 = vmatpush1.bf16.msra.mxu0 0
      %416 = vmatprep.subr.bf16.mxu0 0
      %417 = vmatpush1.bf16.msra.mxu0 0
      %418 = vmatprep.subr.bf16.mxu0 0
      %419 = vmatpush1.bf16.msra.mxu0 0
      %420 = vmatprep.subr.bf16.mxu0 0
      %421 = vmatpush1.bf16.msra.mxu0 0
      %422 = vmatprep.subr.bf16.mxu0 0
      %423 = vmatpush1.bf16.msra.mxu0 0
      %424 = vmatprep.subr.bf16.mxu0 0
      %425 = vmatpush1.bf16.msra.mxu0 0
      %426 = vmatprep.subr.bf16.mxu0 0
      %427 = vmatpush1.bf16.msra.mxu0 0
      %428 = vmatprep.mubr.bf16.mxu0 0
      %429 = vmatmul.mubr.bf16.gmra.mrb[0].mxu0 %v385
      %v430 = vpop.f32.mrb[0].mxu0
      %v431 = vadd.f32 %v338, %v430
      %v432 = vpop.f32.mrb[0].mxu0
      %v433 = vadd.f32 %v340, %v432
      %v434 = vpop.f32.mrb[0].mxu0
      %v435 = vpop.f32.mrb[0].mxu0
      %436 = vdwg.mxu0
      %437 = vmatprep.subr.bf16.mxu0 0
      %438 = vmatpush1.bf16.msra.mxu0 %v394
      %439 = vmatprep.subr.bf16.mxu0 0
      %440 = vmatpush1.bf16.msra.mxu0 0
      %441 = vmatprep.subr.bf16.mxu0 0
      %442 = vmatpush1.bf16.msra.mxu0 0
      %443 = vmatprep.subr.bf16.mxu0 0
      %444 = vmatpush1.bf16.msra.mxu0 0
      %445 = vmatprep.subr.bf16.mxu0 0
      %446 = vmatpush1.bf16.msra.mxu0 0
      %447 = vmatprep.subr.bf16.mxu0 0
      %448 = vmatpush1.bf16.msra.mxu0 0
      %449 = vmatprep.subr.bf16.mxu0 0
      %450 = vmatpush1.bf16.msra.mxu0 0
      %451 = vmatprep.subr.bf16.mxu0 0
      %452 = vmatpush1.bf16.msra.mxu0 0
      %453 = vmatprep.subr.bf16.mxu0 0
      %454 = vmatpush1.bf16.msra.mxu0 0
      %455 = vmatprep.subr.bf16.mxu0 0
      %456 = vmatpush1.bf16.msra.mxu0 0
      %457 = vmatprep.subr.bf16.mxu0 0
      %458 = vmatpush1.bf16.msra.mxu0 0
      %459 = vmatprep.subr.bf16.mxu0 0
      %460 = vmatpush1.bf16.msra.mxu0 0
      %461 = vmatprep.subr.bf16.mxu0 0
      %462 = vmatpush1.bf16.msra.mxu0 0
      %463 = vmatprep.subr.bf16.mxu0 0
      %464 = vmatpush1.bf16.msra.mxu0 0
      %465 = vmatprep.subr.bf16.mxu0 0
      %466 = vmatpush1.bf16.msra.mxu0 0
      %467 = vmatprep.subr.bf16.mxu0 0
      %468 = vmatpush1.bf16.msra.mxu0 0
      %469 = vmatprep.mubr.bf16.mxu0 0
      %470 = vmatmul.mubr.bf16.gmra.mrb[0].mxu0 %v385
      %v471 = vpop.f32.mrb[0].mxu0
      %v472 = vadd.f32 %v379, %v471
      %v473 = vpop.f32.mrb[0].mxu0
      %v474 = vpop.f32.mrb[0].mxu0
      %v475 = vpop.f32.mrb[0].mxu0
      %476 = vdwg.mxu0
      %v477 = vld [vmem:[%s244] sm:$0x3f]
      %s478 = scalar_lea.vmem %s231, 8
      %v479 = vld [vmem:[%s478] sm:$0xf]
      %v481 = vcombine.high %v477, %v477
      %v483 = vunpack.c.l.s4 1983009808
      %v484 = vunpack.c.0.s8 %v483
      %v485 = vlaneseq
      %v486 = vshrl.u32 %v485, 7
      %v487 = vsub.s32 %v484, %v486
      %v488 = vrot.slane %v477, %v487
      %v490 = vunpack.c.l.s4 1983009808
      %v491 = vunpack.c.0.s8 %v490
      %v492 = vlaneseq
      %v493 = vshrl.u32 %v492, 7
      %v494 = vsub.s32 %v491, %v493
      %v495 = vrot.slane %v481, %v494
      %v496 = vcombine.high %v488, %v488
      %497 = vrot.lane.b32.xlu0 %v488, 126
      %v498 = vpop.permute.xlu0 %497
      %499 = vrot.lane.b32.xlu0 %v496, 126
      %v500 = vpop.permute.xlu0 %499
      %501 = vrot.lane.b32.xlu0 %v495, 126
      %v502 = vpop.permute.xlu0 %501
      %vm503 = vcmask 1031168
      %v504 = vsel %vm503, %v498, %v500
      %v505 = vsel %vm503, %v500, %v502
      %v507 = vsel %vm289, %v479, 0
      %v510 = vsel %vm293, %v504, 0
      %v513 = vsel %vm293, %v505, 0
      %v516 = vsel %vm293, %v502, 0
      %518 = vmatprep.subr.bf16.mxu0 %v513
      %519 = vmatpush1.bf16.msra.mxu0 %v510
      %520 = vmatprep.subr.bf16.mxu0 0
      %521 = vmatpush1.bf16.msra.mxu0 0
      %522 = vmatprep.subr.bf16.mxu0 0
      %523 = vmatpush1.bf16.msra.mxu0 0
      %524 = vmatprep.subr.bf16.mxu0 0
      %525 = vmatpush1.bf16.msra.mxu0 0
      %526 = vmatprep.subr.bf16.mxu0 0
      %527 = vmatpush1.bf16.msra.mxu0 0
      %528 = vmatprep.subr.bf16.mxu0 0
      %529 = vmatpush1.bf16.msra.mxu0 0
      %530 = vmatprep.subr.bf16.mxu0 0
      %531 = vmatpush1.bf16.msra.mxu0 0
      %532 = vmatprep.subr.bf16.mxu0 0
      %533 = vmatpush1.bf16.msra.mxu0 0
      %534 = vmatprep.subr.bf16.mxu0 0
      %535 = vmatpush1.bf16.msra.mxu0 0
      %536 = vmatprep.subr.bf16.mxu0 0
      %537 = vmatpush1.bf16.msra.mxu0 0
      %538 = vmatprep.subr.bf16.mxu0 0
      %539 = vmatpush1.bf16.msra.mxu0 0
      %540 = vmatprep.subr.bf16.mxu0 0
      %541 = vmatpush1.bf16.msra.mxu0 0
      %542 = vmatprep.subr.bf16.mxu0 0
      %543 = vmatpush1.bf16.msra.mxu0 0
      %544 = vmatprep.subr.bf16.mxu0 0
      %545 = vmatpush1.bf16.msra.mxu0 0
      %546 = vmatprep.subr.bf16.mxu0 0
      %547 = vmatpush1.bf16.msra.mxu0 0
      %548 = vmatprep.subr.bf16.mxu0 0
      %549 = vmatpush1.bf16.msra.mxu0 0
      %550 = vmatprep.mubr.bf16.mxu0 0
      %551 = vmatmul.mubr.bf16.gmra.mrb[0].mxu0 %v507
      %v552 = vpop.f32.mrb[0].mxu0
      %v553 = vadd.f32 0.0, %v552
      %v554 = vpop.f32.mrb[0].mxu0
      %v555 = vadd.f32 0.0, %v554
      %v556 = vpop.f32.mrb[0].mxu0
      %v557 = vpop.f32.mrb[0].mxu0
      %558 = vdwg.mxu0
      %559 = vmatprep.subr.bf16.mxu0 0
      %560 = vmatpush1.bf16.msra.mxu0 %v516
      %561 = vmatprep.subr.bf16.mxu0 0
      %562 = vmatpush1.bf16.msra.mxu0 0
      %563 = vmatprep.subr.bf16.mxu0 0
      %564 = vmatpush1.bf16.msra.mxu0 0
      %565 = vmatprep.subr.bf16.mxu0 0
      %566 = vmatpush1.bf16.msra.mxu0 0
      %567 = vmatprep.subr.bf16.mxu0 0
      %568 = vmatpush1.bf16.msra.mxu0 0
      %569 = vmatprep.subr.bf16.mxu0 0
      %570 = vmatpush1.bf16.msra.mxu0 0
      %571 = vmatprep.subr.bf16.mxu0 0
      %572 = vmatpush1.bf16.msra.mxu0 0
      %573 = vmatprep.subr.bf16.mxu0 0
      %574 = vmatpush1.bf16.msra.mxu0 0
      %575 = vmatprep.subr.bf16.mxu0 0
      %576 = vmatpush1.bf16.msra.mxu0 0
      %577 = vmatprep.subr.bf16.mxu0 0
      %578 = vmatpush1.bf16.msra.mxu0 0
      %579 = vmatprep.subr.bf16.mxu0 0
      %580 = vmatpush1.bf16.msra.mxu0 0
      %581 = vmatprep.subr.bf16.mxu0 0
      %582 = vmatpush1.bf16.msra.mxu0 0
      %583 = vmatprep.subr.bf16.mxu0 0
      %584 = vmatpush1.bf16.msra.mxu0 0
      %585 = vmatprep.subr.bf16.mxu0 0
      %586 = vmatpush1.bf16.msra.mxu0 0
      %587 = vmatprep.subr.bf16.mxu0 0
      %588 = vmatpush1.bf16.msra.mxu0 0
      %589 = vmatprep.subr.bf16.mxu0 0
      %590 = vmatpush1.bf16.msra.mxu0 0
      %591 = vmatprep.mubr.bf16.mxu0 0
      %592 = vmatmul.mubr.bf16.gmra.mrb[0].mxu0 %v507
      %v593 = vpop.f32.mrb[0].mxu0
      %v594 = vadd.f32 0.0, %v593
      %v595 = vpop.f32.mrb[0].mxu0
      %v596 = vpop.f32.mrb[0].mxu0
      %v597 = vpop.f32.mrb[0].mxu0
      %598 = vdwg.mxu0
      %v599 = vadd.f32 %v431, %v553
      %v600 = vadd.f32 %v433, %v555
      %v601 = vadd.f32 %v472, %v594
      %v602 = vld [vmem:[%s244] sm:$0x3f]
      %s603 = scalar_lea.vmem %s231, 12
      %v604 = vld [vmem:[%s603] sm:$0xf]
      %v606 = vcombine.high %v602, %v602
      %v608 = vunpack.c.l.s4 1983009808
      %v609 = vunpack.c.0.s8 %v608
      %v610 = vlaneseq
      %v611 = vshrl.u32 %v610, 7
      %v612 = vsub.s32 %v609, %v611
      %v613 = vrot.slane %v602, %v612
      %v615 = vunpack.c.l.s4 1983009808
      %v616 = vunpack.c.0.s8 %v615
      %v617 = vlaneseq
      %v618 = vshrl.u32 %v617, 7
      %v619 = vsub.s32 %v616, %v618
      %v620 = vrot.slane %v606, %v619
      %v621 = vcombine.high %v613, %v613
      %622 = vrot.lane.b32.xlu0 %v613, 110
      %v623 = vpop.permute.xlu0 %622
      %624 = vrot.lane.b32.xlu0 %v621, 110
      %v625 = vpop.permute.xlu0 %624
      %626 = vrot.lane.b32.xlu0 %v620, 110
      %v627 = vpop.permute.xlu0 %626
      %vm628 = vcmask 900096
      %v629 = vsel %vm628, %v623, %v625
      %v630 = vsel %vm628, %v625, %v627
      %v632 = vsel %vm289, %v604, 0
      %v635 = vsel %vm293, %v629, 0
      %v638 = vsel %vm293, %v630, 0
      %v641 = vsel %vm293, %v627, 0
      %643 = vmatprep.subr.bf16.mxu0 %v638
      %644 = vmatpush1.bf16.msra.mxu0 %v635
      %645 = vmatprep.subr.bf16.mxu0 0
      %646 = vmatpush1.bf16.msra.mxu0 0
      %647 = vmatprep.subr.bf16.mxu0 0
      %648 = vmatpush1.bf16.msra.mxu0 0
      %649 = vmatprep.subr.bf16.mxu0 0
      %650 = vmatpush1.bf16.msra.mxu0 0
      %651 = vmatprep.subr.bf16.mxu0 0
      %652 = vmatpush1.bf16.msra.mxu0 0
      %653 = vmatprep.subr.bf16.mxu0 0
      %654 = vmatpush1.bf16.msra.mxu0 0
      %655 = vmatprep.subr.bf16.mxu0 0
      %656 = vmatpush1.bf16.msra.mxu0 0
      %657 = vmatprep.subr.bf16.mxu0 0
      %658 = vmatpush1.bf16.msra.mxu0 0
      %659 = vmatprep.subr.bf16.mxu0 0
      %660 = vmatpush1.bf16.msra.mxu0 0
      %661 = vmatprep.subr.bf16.mxu0 0
      %662 = vmatpush1.bf16.msra.mxu0 0
      %663 = vmatprep.subr.bf16.mxu0 0
      %664 = vmatpush1.bf16.msra.mxu0 0
      %665 = vmatprep.subr.bf16.mxu0 0
      %666 = vmatpush1.bf16.msra.mxu0 0
      %667 = vmatprep.subr.bf16.mxu0 0
      %668 = vmatpush1.bf16.msra.mxu0 0
      %669 = vmatprep.subr.bf16.mxu0 0
      %670 = vmatpush1.bf16.msra.mxu0 0
      %671 = vmatprep.subr.bf16.mxu0 0
      %672 = vmatpush1.bf16.msra.mxu0 0
      %673 = vmatprep.subr.bf16.mxu0 0
      %674 = vmatpush1.bf16.msra.mxu0 0
      %675 = vmatprep.mubr.bf16.mxu0 0
      %676 = vmatmul.mubr.bf16.gmra.mrb[0].mxu0 %v632
      %v677 = vpop.f32.mrb[0].mxu0
      %v678 = vadd.f32 0.0, %v677
      %v679 = vpop.f32.mrb[0].mxu0
      %v680 = vadd.f32 0.0, %v679
      %v681 = vpop.f32.mrb[0].mxu0
      %v682 = vpop.f32.mrb[0].mxu0
      %683 = vdwg.mxu0
      %684 = vmatprep.subr.bf16.mxu0 0
      %685 = vmatpush1.bf16.msra.mxu0 %v641
      %686 = vmatprep.subr.bf16.mxu0 0
      %687 = vmatpush1.bf16.msra.mxu0 0
      %688 = vmatprep.subr.bf16.mxu0 0
      %689 = vmatpush1.bf16.msra.mxu0 0
      %690 = vmatprep.subr.bf16.mxu0 0
      %691 = vmatpush1.bf16.msra.mxu0 0
      %692 = vmatprep.subr.bf16.mxu0 0
      %693 = vmatpush1.bf16.msra.mxu0 0
      %694 = vmatprep.subr.bf16.mxu0 0
      %695 = vmatpush1.bf16.msra.mxu0 0
      %696 = vmatprep.subr.bf16.mxu0 0
      %697 = vmatpush1.bf16.msra.mxu0 0
      %698 = vmatprep.subr.bf16.mxu0 0
      %699 = vmatpush1.bf16.msra.mxu0 0
      %700 = vmatprep.subr.bf16.mxu0 0
      %701 = vmatpush1.bf16.msra.mxu0 0
      %702 = vmatprep.subr.bf16.mxu0 0
      %703 = vmatpush1.bf16.msra.mxu0 0
      %704 = vmatprep.subr.bf16.mxu0 0
      %705 = vmatpush1.bf16.msra.mxu0 0
      %706 = vmatprep.subr.bf16.mxu0 0
      %707 = vmatpush1.bf16.msra.mxu0 0
      %708 = vmatprep.subr.bf16.mxu0 0
      %709 = vmatpush1.bf16.msra.mxu0 0
      %710 = vmatprep.subr.bf16.mxu0 0
      %711 = vmatpush1.bf16.msra.mxu0 0
      %712 = vmatprep.subr.bf16.mxu0 0
      %713 = vmatpush1.bf16.msra.mxu0 0
      %714 = vmatprep.subr.bf16.mxu0 0
      %715 = vmatpush1.bf16.msra.mxu0 0
      %716 = vmatprep.mubr.bf16.mxu0 0
      %717 = vmatmul.mubr.bf16.gmra.mrb[0].mxu0 %v632
      %v718 = vpop.f32.mrb[0].mxu0
      %v719 = vadd.f32 0.0, %v718
      %v720 = vpop.f32.mrb[0].mxu0
      %v721 = vpop.f32.mrb[0].mxu0
      %v722 = vpop.f32.mrb[0].mxu0
      %723 = vdwg.mxu0
      %v724 = vadd.f32 %v599, %v678
      %v725 = vadd.f32 %v600, %v680
      %v726 = vadd.f32 %v601, %v719
      %v727 = vld [vmem:[%s244] sm:$0x3f]
      %s728 = scalar_lea.vmem %s231, 16
      %v729 = vld [vmem:[%s728] sm:$0xf]
      %v731 = vcombine.high %v727, %v727
      %v733 = vunpack.c.l.s4 1983009808
      %v734 = vunpack.c.0.s8 %v733
      %v735 = vlaneseq
      %v736 = vshrl.u32 %v735, 7
      %v737 = vsub.s32 %v734, %v736
      %v738 = vrot.slane %v727, %v737
      %v740 = vunpack.c.l.s4 1983009808
      %v741 = vunpack.c.0.s8 %v740
      %v742 = vlaneseq
      %v743 = vshrl.u32 %v742, 7
      %v744 = vsub.s32 %v741, %v743
      %v745 = vrot.slane %v731, %v744
      %v746 = vcombine.high %v738, %v738
      %747 = vrot.lane.b32.xlu0 %v738, 109
      %v748 = vpop.permute.xlu0 %747
      %749 = vrot.lane.b32.xlu0 %v746, 109
      %v750 = vpop.permute.xlu0 %749
      %751 = vrot.lane.b32.xlu0 %v745, 109
      %v752 = vpop.permute.xlu0 %751
      %vm753 = vcmask 891904
      %v754 = vsel %vm753, %v748, %v750
      %v755 = vsel %vm753, %v750, %v752
      %v757 = vsel %vm289, %v729, 0
      %v760 = vsel %vm293, %v754, 0
      %v763 = vsel %vm293, %v755, 0
      %v766 = vsel %vm293, %v752, 0
      %768 = vmatprep.subr.bf16.mxu0 %v763
      %769 = vmatpush1.bf16.msra.mxu0 %v760
      %770 = vmatprep.subr.bf16.mxu0 0
      %771 = vmatpush1.bf16.msra.mxu0 0
      %772 = vmatprep.subr.bf16.mxu0 0
      %773 = vmatpush1.bf16.msra.mxu0 0
      %774 = vmatprep.subr.bf16.mxu0 0
      %775 = vmatpush1.bf16.msra.mxu0 0
      %776 = vmatprep.subr.bf16.mxu0 0
      %777 = vmatpush1.bf16.msra.mxu0 0
      %778 = vmatprep.subr.bf16.mxu0 0
      %779 = vmatpush1.bf16.msra.mxu0 0
      %780 = vmatprep.subr.bf16.mxu0 0
      %781 = vmatpush1.bf16.msra.mxu0 0
      %782 = vmatprep.subr.bf16.mxu0 0
      %783 = vmatpush1.bf16.msra.mxu0 0
      %784 = vmatprep.subr.bf16.mxu0 0
      %785 = vmatpush1.bf16.msra.mxu0 0
      %786 = vmatprep.subr.bf16.mxu0 0
      %787 = vmatpush1.bf16.msra.mxu0 0
      %788 = vmatprep.subr.bf16.mxu0 0
      %789 = vmatpush1.bf16.msra.mxu0 0
      %790 = vmatprep.subr.bf16.mxu0 0
      %791 = vmatpush1.bf16.msra.mxu0 0
      %792 = vmatprep.subr.bf16.mxu0 0
      %793 = vmatpush1.bf16.msra.mxu0 0
      %794 = vmatprep.subr.bf16.mxu0 0
      %795 = vmatpush1.bf16.msra.mxu0 0
      %796 = vmatprep.subr.bf16.mxu0 0
      %797 = vmatpush1.bf16.msra.mxu0 0
      %798 = vmatprep.subr.bf16.mxu0 0
      %799 = vmatpush1.bf16.msra.mxu0 0
      %800 = vmatprep.mubr.bf16.mxu0 0
      %801 = vmatmul.mubr.bf16.gmra.mrb[0].mxu0 %v757
      %v802 = vpop.f32.mrb[0].mxu0
      %v803 = vadd.f32 0.0, %v802
      %v804 = vpop.f32.mrb[0].mxu0
      %v805 = vadd.f32 0.0, %v804
      %v806 = vpop.f32.mrb[0].mxu0
      %v807 = vpop.f32.mrb[0].mxu0
      %808 = vdwg.mxu0
      %809 = vmatprep.subr.bf16.mxu0 0
      %810 = vmatpush1.bf16.msra.mxu0 %v766
      %811 = vmatprep.subr.bf16.mxu0 0
      %812 = vmatpush1.bf16.msra.mxu0 0
      %813 = vmatprep.subr.bf16.mxu0 0
      %814 = vmatpush1.bf16.msra.mxu0 0
      %815 = vmatprep.subr.bf16.mxu0 0
      %816 = vmatpush1.bf16.msra.mxu0 0
      %817 = vmatprep.subr.bf16.mxu0 0
      %818 = vmatpush1.bf16.msra.mxu0 0
      %819 = vmatprep.subr.bf16.mxu0 0
      %820 = vmatpush1.bf16.msra.mxu0 0
      %821 = vmatprep.subr.bf16.mxu0 0
      %822 = vmatpush1.bf16.msra.mxu0 0
      %823 = vmatprep.subr.bf16.mxu0 0
      %824 = vmatpush1.bf16.msra.mxu0 0
      %825 = vmatprep.subr.bf16.mxu0 0
      %826 = vmatpush1.bf16.msra.mxu0 0
      %827 = vmatprep.subr.bf16.mxu0 0
      %828 = vmatpush1.bf16.msra.mxu0 0
      %829 = vmatprep.subr.bf16.mxu0 0
      %830 = vmatpush1.bf16.msra.mxu0 0
      %831 = vmatprep.subr.bf16.mxu0 0
      %832 = vmatpush1.bf16.msra.mxu0 0
      %833 = vmatprep.subr.bf16.mxu0 0
      %834 = vmatpush1.bf16.msra.mxu0 0
      %835 = vmatprep.subr.bf16.mxu0 0
      %836 = vmatpush1.bf16.msra.mxu0 0
      %837 = vmatprep.subr.bf16.mxu0 0
      %838 = vmatpush1.bf16.msra.mxu0 0
      %839 = vmatprep.subr.bf16.mxu0 0
      %840 = vmatpush1.bf16.msra.mxu0 0
      %841 = vmatprep.mubr.bf16.mxu0 0
      %842 = vmatmul.mubr.bf16.gmra.mrb[0].mxu0 %v757
      %v843 = vpop.f32.mrb[0].mxu0
      %v844 = vadd.f32 0.0, %v843
      %v845 = vpop.f32.mrb[0].mxu0
      %v846 = vpop.f32.mrb[0].mxu0
      %v847 = vpop.f32.mrb[0].mxu0
      %848 = vdwg.mxu0
      %v849 = vadd.f32 %v724, %v803
      %v850 = vadd.f32 %v725, %v805
      %v851 = vadd.f32 %v726, %v844
      %v852 = vld [vmem:[%s244] sm:$0x3f]
      %s853 = scalar_lea.vmem %s231, 20
      %v854 = vld [vmem:[%s853] sm:$0xf]
      %v856 = vcombine.high %v852, %v852
      %v858 = vunpack.c.l.s4 1983009808
      %v859 = vunpack.c.0.s8 %v858
      %v860 = vlaneseq
      %v861 = vshrl.u32 %v860, 7
      %v862 = vsub.s32 %v859, %v861
      %v863 = vrot.slane %v852, %v862
      %v865 = vunpack.c.l.s4 1983009808
      %v866 = vunpack.c.0.s8 %v865
      %v867 = vlaneseq
      %v868 = vshrl.u32 %v867, 7
      %v869 = vsub.s32 %v866, %v868
      %v870 = vrot.slane %v856, %v869
      %v871 = vcombine.high %v863, %v863
      %872 = vrot.lane.b32.xlu0 %v863, 108
      %v873 = vpop.permute.xlu0 %872
      %874 = vrot.lane.b32.xlu0 %v871, 108
      %v875 = vpop.permute.xlu0 %874
      %876 = vrot.lane.b32.xlu0 %v870, 108
      %v877 = vpop.permute.xlu0 %876
      %vm878 = vcmask 883712
      %v879 = vsel %vm878, %v873, %v875
      %v880 = vsel %vm878, %v875, %v877
      %v882 = vsel %vm289, %v854, 0
      %v885 = vsel %vm293, %v879, 0
      %v888 = vsel %vm293, %v880, 0
      %v891 = vsel %vm293, %v877, 0
      %893 = vmatprep.subr.bf16.mxu0 %v888
      %894 = vmatpush1.bf16.msra.mxu0 %v885
      %895 = vmatprep.subr.bf16.mxu0 0
      %896 = vmatpush1.bf16.msra.mxu0 0
      %897 = vmatprep.subr.bf16.mxu0 0
      %898 = vmatpush1.bf16.msra.mxu0 0
      %899 = vmatprep.subr.bf16.mxu0 0
      %900 = vmatpush1.bf16.msra.mxu0 0
      %901 = vmatprep.subr.bf16.mxu0 0
      %902 = vmatpush1.bf16.msra.mxu0 0
      %903 = vmatprep.subr.bf16.mxu0 0
      %904 = vmatpush1.bf16.msra.mxu0 0
      %905 = vmatprep.subr.bf16.mxu0 0
      %906 = vmatpush1.bf16.msra.mxu0 0
      %907 = vmatprep.subr.bf16.mxu0 0
      %908 = vmatpush1.bf16.msra.mxu0 0
      %909 = vmatprep.subr.bf16.mxu0 0
      %910 = vmatpush1.bf16.msra.mxu0 0
      %911 = vmatprep.subr.bf16.mxu0 0
      %912 = vmatpush1.bf16.msra.mxu0 0
      %913 = vmatprep.subr.bf16.mxu0 0
      %914 = vmatpush1.bf16.msra.mxu0 0
      %915 = vmatprep.subr.bf16.mxu0 0
      %916 = vmatpush1.bf16.msra.mxu0 0
      %917 = vmatprep.subr.bf16.mxu0 0
      %918 = vmatpush1.bf16.msra.mxu0 0
      %919 = vmatprep.subr.bf16.mxu0 0
      %920 = vmatpush1.bf16.msra.mxu0 0
      %921 = vmatprep.subr.bf16.mxu0 0
      %922 = vmatpush1.bf16.msra.mxu0 0
      %923 = vmatprep.subr.bf16.mxu0 0
      %924 = vmatpush1.bf16.msra.mxu0 0
      %925 = vmatprep.mubr.bf16.mxu0 0
      %926 = vmatmul.mubr.bf16.gmra.mrb[0].mxu0 %v882
      %v927 = vpop.f32.mrb[0].mxu0
      %v928 = vadd.f32 0.0, %v927
      %v929 = vpop.f32.mrb[0].mxu0
      %v930 = vadd.f32 0.0, %v929
      %v931 = vpop.f32.mrb[0].mxu0
      %v932 = vpop.f32.mrb[0].mxu0
      %933 = vdwg.mxu0
      %934 = vmatprep.subr.bf16.mxu0 0
      %935 = vmatpush1.bf16.msra.mxu0 %v891
      %936 = vmatprep.subr.bf16.mxu0 0
      %937 = vmatpush1.bf16.msra.mxu0 0
      %938 = vmatprep.subr.bf16.mxu0 0
      %939 = vmatpush1.bf16.msra.mxu0 0
      %940 = vmatprep.subr.bf16.mxu0 0
      %941 = vmatpush1.bf16.msra.mxu0 0
      %942 = vmatprep.subr.bf16.mxu0 0
      %943 = vmatpush1.bf16.msra.mxu0 0
      %944 = vmatprep.subr.bf16.mxu0 0
      %945 = vmatpush1.bf16.msra.mxu0 0
      %946 = vmatprep.subr.bf16.mxu0 0
      %947 = vmatpush1.bf16.msra.mxu0 0
      %948 = vmatprep.subr.bf16.mxu0 0
      %949 = vmatpush1.bf16.msra.mxu0 0
      %950 = vmatprep.subr.bf16.mxu0 0
      %951 = vmatpush1.bf16.msra.mxu0 0
      %952 = vmatprep.subr.bf16.mxu0 0
      %953 = vmatpush1.bf16.msra.mxu0 0
      %954 = vmatprep.subr.bf16.mxu0 0
      %955 = vmatpush1.bf16.msra.mxu0 0
      %956 = vmatprep.subr.bf16.mxu0 0
      %957 = vmatpush1.bf16.msra.mxu0 0
      %958 = vmatprep.subr.bf16.mxu0 0
      %959 = vmatpush1.bf16.msra.mxu0 0
      %960 = vmatprep.subr.bf16.mxu0 0
      %961 = vmatpush1.bf16.msra.mxu0 0
      %962 = vmatprep.subr.bf16.mxu0 0
      %963 = vmatpush1.bf16.msra.mxu0 0
      %964 = vmatprep.subr.bf16.mxu0 0
      %965 = vmatpush1.bf16.msra.mxu0 0
      %966 = vmatprep.mubr.bf16.mxu0 0
      %967 = vmatmul.mubr.bf16.gmra.mrb[0].mxu0 %v882
      %v968 = vpop.f32.mrb[0].mxu0
      %v969 = vadd.f32 0.0, %v968
      %v970 = vpop.f32.mrb[0].mxu0
      %v971 = vpop.f32.mrb[0].mxu0
      %v972 = vpop.f32.mrb[0].mxu0
      %973 = vdwg.mxu0
      %v974 = vadd.f32 %v849, %v928
      %v975 = vadd.f32 %v850, %v930
      %v976 = vadd.f32 %v851, %v969
      %v977 = vld [vmem:[%s244] sm:$0x3f]
      %s978 = scalar_lea.vmem %s231, 24
      %v979 = vld [vmem:[%s978] sm:$0xf]
      %v981 = vcombine.high %v977, %v977
      %v983 = vunpack.c.l.s4 1983009808
      %v984 = vunpack.c.0.s8 %v983
      %v985 = vlaneseq
      %v986 = vshrl.u32 %v985, 7
      %v987 = vsub.s32 %v984, %v986
      %v988 = vrot.slane %v977, %v987
      %v990 = vunpack.c.l.s4 1983009808
      %v991 = vunpack.c.0.s8 %v990
      %v992 = vlaneseq
      %v993 = vshrl.u32 %v992, 7
      %v994 = vsub.s32 %v991, %v993
      %v995 = vrot.slane %v981, %v994
      %v996 = vcombine.high %v988, %v988
      %997 = vrot.lane.b32.xlu0 %v988, 92
      %v998 = vpop.permute.xlu0 %997
      %999 = vrot.lane.b32.xlu0 %v996, 92
      %v1000 = vpop.permute.xlu0 %999
      %1001 = vrot.lane.b32.xlu0 %v995, 92
      %v1002 = vpop.permute.xlu0 %1001
      %vm1003 = vcmask 752640
      %v1004 = vsel %vm1003, %v998, %v1000
      %v1005 = vsel %vm1003, %v1000, %v1002
      %v1007 = vsel %vm289, %v979, 0
      %v1010 = vsel %vm293, %v1004, 0
      %v1013 = vsel %vm293, %v1005, 0
      %v1016 = vsel %vm293, %v1002, 0
      %1018 = vmatprep.subr.bf16.mxu0 %v1013
      %1019 = vmatpush1.bf16.msra.mxu0 %v1010
      %1020 = vmatprep.subr.bf16.mxu0 0
      %1021 = vmatpush1.bf16.msra.mxu0 0
      %1022 = vmatprep.subr.bf16.mxu0 0
      %1023 = vmatpush1.bf16.msra.mxu0 0
      %1024 = vmatprep.subr.bf16.mxu0 0
      %1025 = vmatpush1.bf16.msra.mxu0 0
      %1026 = vmatprep.subr.bf16.mxu0 0
      %1027 = vmatpush1.bf16.msra.mxu0 0
      %1028 = vmatprep.subr.bf16.mxu0 0
      %1029 = vmatpush1.bf16.msra.mxu0 0
      %1030 = vmatprep.subr.bf16.mxu0 0
      %1031 = vmatpush1.bf16.msra.mxu0 0
      %1032 = vmatprep.subr.bf16.mxu0 0
      %1033 = vmatpush1.bf16.msra.mxu0 0
      %1034 = vmatprep.subr.bf16.mxu0 0
      %1035 = vmatpush1.bf16.msra.mxu0 0
      %1036 = vmatprep.subr.bf16.mxu0 0
      %1037 = vmatpush1.bf16.msra.mxu0 0
      %1038 = vmatprep.subr.bf16.mxu0 0
      %1039 = vmatpush1.bf16.msra.mxu0 0
      %1040 = vmatprep.subr.bf16.mxu0 0
      %1041 = vmatpush1.bf16.msra.mxu0 0
      %1042 = vmatprep.subr.bf16.mxu0 0
      %1043 = vmatpush1.bf16.msra.mxu0 0
      %1044 = vmatprep.subr.bf16.mxu0 0
      %1045 = vmatpush1.bf16.msra.mxu0 0
      %1046 = vmatprep.subr.bf16.mxu0 0
      %1047 = vmatpush1.bf16.msra.mxu0 0
      %1048 = vmatprep.subr.bf16.mxu0 0
      %1049 = vmatpush1.bf16.msra.mxu0 0
      %1050 = vmatprep.mubr.bf16.mxu0 0
      %1051 = vmatmul.mubr.bf16.gmra.mrb[0].mxu0 %v1007
      %v1052 = vpop.f32.mrb[0].mxu0
      %v1053 = vadd.f32 0.0, %v1052
      %v1054 = vpop.f32.mrb[0].mxu0
      %v1055 = vadd.f32 0.0, %v1054
      %v1056 = vpop.f32.mrb[0].mxu0
      %v1057 = vpop.f32.mrb[0].mxu0
      %1058 = vdwg.mxu0
      %1059 = vmatprep.subr.bf16.mxu0 0
      %1060 = vmatpush1.bf16.msra.mxu0 %v1016
      %1061 = vmatprep.subr.bf16.mxu0 0
      %1062 = vmatpush1.bf16.msra.mxu0 0
      %1063 = vmatprep.subr.bf16.mxu0 0
      %1064 = vmatpush1.bf16.msra.mxu0 0
      %1065 = vmatprep.subr.bf16.mxu0 0
      %1066 = vmatpush1.bf16.msra.mxu0 0
      %1067 = vmatprep.subr.bf16.mxu0 0
      %1068 = vmatpush1.bf16.msra.mxu0 0
      %1069 = vmatprep.subr.bf16.mxu0 0
      %1070 = vmatpush1.bf16.msra.mxu0 0
      %1071 = vmatprep.subr.bf16.mxu0 0
      %1072 = vmatpush1.bf16.msra.mxu0 0
      %1073 = vmatprep.subr.bf16.mxu0 0
      %1074 = vmatpush1.bf16.msra.mxu0 0
      %1075 = vmatprep.subr.bf16.mxu0 0
      %1076 = vmatpush1.bf16.msra.mxu0 0
      %1077 = vmatprep.subr.bf16.mxu0 0
      %1078 = vmatpush1.bf16.msra.mxu0 0
      %1079 = vmatprep.subr.bf16.mxu0 0
      %1080 = vmatpush1.bf16.msra.mxu0 0
      %1081 = vmatprep.subr.bf16.mxu0 0
      %1082 = vmatpush1.bf16.msra.mxu0 0
      %1083 = vmatprep.subr.bf16.mxu0 0
      %1084 = vmatpush1.bf16.msra.mxu0 0
      %1085 = vmatprep.subr.bf16.mxu0 0
      %1086 = vmatpush1.bf16.msra.mxu0 0
      %1087 = vmatprep.subr.bf16.mxu0 0
      %1088 = vmatpush1.bf16.msra.mxu0 0
      %1089 = vmatprep.subr.bf16.mxu0 0
      %1090 = vmatpush1.bf16.msra.mxu0 0
      %1091 = vmatprep.mubr.bf16.mxu0 0
      %1092 = vmatmul.mubr.bf16.gmra.mrb[0].mxu0 %v1007
      %v1093 = vpop.f32.mrb[0].mxu0
      %v1094 = vadd.f32 0.0, %v1093
      %v1095 = vpop.f32.mrb[0].mxu0
      %v1096 = vpop.f32.mrb[0].mxu0
      %v1097 = vpop.f32.mrb[0].mxu0
      %1098 = vdwg.mxu0
      %v1099 = vadd.f32 %v974, %v1053
      %v1100 = vadd.f32 %v975, %v1055
      %v1101 = vadd.f32 %v976, %v1094
      %v1102 = vld [vmem:[%s244] sm:$0x3f]
      %s1103 = scalar_lea.vmem %s231, 28
      %v1104 = vld [vmem:[%s1103] sm:$0xf]
      %v1106 = vcombine.high %v1102, %v1102
      %v1108 = vunpack.c.l.s4 1983009808
      %v1109 = vunpack.c.0.s8 %v1108
      %v1110 = vlaneseq
      %v1111 = vshrl.u32 %v1110, 7
      %v1112 = vsub.s32 %v1109, %v1111
      %v1113 = vrot.slane %v1102, %v1112
      %v1115 = vunpack.c.l.s4 1983009808
      %v1116 = vunpack.c.0.s8 %v1115
      %v1117 = vlaneseq
      %v1118 = vshrl.u32 %v1117, 7
      %v1119 = vsub.s32 %v1116, %v1118
      %v1120 = vrot.slane %v1106, %v1119
      %v1121 = vcombine.high %v1113, %v1113
      %1122 = vrot.lane.b32.xlu0 %v1113, 91
      %v1123 = vpop.permute.xlu0 %1122
      %1124 = vrot.lane.b32.xlu0 %v1121, 91
      %v1125 = vpop.permute.xlu0 %1124
      %1126 = vrot.lane.b32.xlu0 %v1120, 91
      %v1127 = vpop.permute.xlu0 %1126
      %vm1128 = vcmask 744448
      %v1129 = vsel %vm1128, %v1123, %v1125
      %v1130 = vsel %vm1128, %v1125, %v1127
      %v1132 = vsel %vm289, %v1104, 0
      %v1135 = vsel %vm293, %v1129, 0
      %v1138 = vsel %vm293, %v1130, 0
      %v1141 = vsel %vm293, %v1127, 0
      %1143 = vmatprep.subr.bf16.mxu0 %v1138
      %1144 = vmatpush1.bf16.msra.mxu0 %v1135
      %1145 = vmatprep.subr.bf16.mxu0 0
      %1146 = vmatpush1.bf16.msra.mxu0 0
      %1147 = vmatprep.subr.bf16.mxu0 0
      %1148 = vmatpush1.bf16.msra.mxu0 0
      %1149 = vmatprep.subr.bf16.mxu0 0
      %1150 = vmatpush1.bf16.msra.mxu0 0
      %1151 = vmatprep.subr.bf16.mxu0 0
      %1152 = vmatpush1.bf16.msra.mxu0 0
      %1153 = vmatprep.subr.bf16.mxu0 0
      %1154 = vmatpush1.bf16.msra.mxu0 0
      %1155 = vmatprep.subr.bf16.mxu0 0
      %1156 = vmatpush1.bf16.msra.mxu0 0
      %1157 = vmatprep.subr.bf16.mxu0 0
      %1158 = vmatpush1.bf16.msra.mxu0 0
      %1159 = vmatprep.subr.bf16.mxu0 0
      %1160 = vmatpush1.bf16.msra.mxu0 0
      %1161 = vmatprep.subr.bf16.mxu0 0
      %1162 = vmatpush1.bf16.msra.mxu0 0
      %1163 = vmatprep.subr.bf16.mxu0 0
      %1164 = vmatpush1.bf16.msra.mxu0 0
      %1165 = vmatprep.subr.bf16.mxu0 0
      %1166 = vmatpush1.bf16.msra.mxu0 0
      %1167 = vmatprep.subr.bf16.mxu0 0
      %1168 = vmatpush1.bf16.msra.mxu0 0
      %1169 = vmatprep.subr.bf16.mxu0 0
      %1170 = vmatpush1.bf16.msra.mxu0 0
      %1171 = vmatprep.subr.bf16.mxu0 0
      %1172 = vmatpush1.bf16.msra.mxu0 0
      %1173 = vmatprep.subr.bf16.mxu0 0
      %1174 = vmatpush1.bf16.msra.mxu0 0
      %1175 = vmatprep.mubr.bf16.mxu0 0
      %1176 = vmatmul.mubr.bf16.gmra.mrb[0].mxu0 %v1132
      %v1177 = vpop.f32.mrb[0].mxu0
      %v1178 = vadd.f32 0.0, %v1177
      %v1179 = vpop.f32.mrb[0].mxu0
      %v1180 = vadd.f32 0.0, %v1179
      %v1181 = vpop.f32.mrb[0].mxu0
      %v1182 = vpop.f32.mrb[0].mxu0
      %1183 = vdwg.mxu0
      %1184 = vmatprep.subr.bf16.mxu0 0
      %1185 = vmatpush1.bf16.msra.mxu0 %v1141
      %1186 = vmatprep.subr.bf16.mxu0 0
      %1187 = vmatpush1.bf16.msra.mxu0 0
      %1188 = vmatprep.subr.bf16.mxu0 0
      %1189 = vmatpush1.bf16.msra.mxu0 0
      %1190 = vmatprep.subr.bf16.mxu0 0
      %1191 = vmatpush1.bf16.msra.mxu0 0
      %1192 = vmatprep.subr.bf16.mxu0 0
      %1193 = vmatpush1.bf16.msra.mxu0 0
      %1194 = vmatprep.subr.bf16.mxu0 0
      %1195 = vmatpush1.bf16.msra.mxu0 0
      %1196 = vmatprep.subr.bf16.mxu0 0
      %1197 = vmatpush1.bf16.msra.mxu0 0
      %1198 = vmatprep.subr.bf16.mxu0 0
      %1199 = vmatpush1.bf16.msra.mxu0 0
      %1200 = vmatprep.subr.bf16.mxu0 0
      %1201 = vmatpush1.bf16.msra.mxu0 0
      %1202 = vmatprep.subr.bf16.mxu0 0
      %1203 = vmatpush1.bf16.msra.mxu0 0
      %1204 = vmatprep.subr.bf16.mxu0 0
      %1205 = vmatpush1.bf16.msra.mxu0 0
      %1206 = vmatprep.subr.bf16.mxu0 0
      %1207 = vmatpush1.bf16.msra.mxu0 0
      %1208 = vmatprep.subr.bf16.mxu0 0
      %1209 = vmatpush1.bf16.msra.mxu0 0
      %1210 = vmatprep.subr.bf16.mxu0 0
      %1211 = vmatpush1.bf16.msra.mxu0 0
      %1212 = vmatprep.subr.bf16.mxu0 0
      %1213 = vmatpush1.bf16.msra.mxu0 0
      %1214 = vmatprep.subr.bf16.mxu0 0
      %1215 = vmatpush1.bf16.msra.mxu0 0
      %1216 = vmatprep.mubr.bf16.mxu0 0
      %1217 = vmatmul.mubr.bf16.gmra.mrb[0].mxu0 %v1132
      %v1218 = vpop.f32.mrb[0].mxu0
      %v1219 = vadd.f32 0.0, %v1218
      %v1220 = vpop.f32.mrb[0].mxu0
      %v1221 = vpop.f32.mrb[0].mxu0
      %v1222 = vpop.f32.mrb[0].mxu0
      %1223 = vdwg.mxu0
      %v1224 = vadd.f32 %v1099, %v1178
      %v1225 = vadd.f32 %v1100, %v1180
      %v1226 = vadd.f32 %v1101, %v1219
      %v1227 = vld [vmem:[%s244] sm:$0x3f]
      %s1228 = scalar_lea.vmem %s231, 32
      %v1229 = vld [vmem:[%s1228] sm:$0xf]
      %v1231 = vcombine.high %v1227, %v1227
      %v1233 = vunpack.c.l.s4 1983009808
      %v1234 = vunpack.c.0.s8 %v1233
      %v1235 = vlaneseq
      %v1236 = vshrl.u32 %v1235, 7
      %v1237 = vsub.s32 %v1234, %v1236
      %v1238 = vrot.slane %v1227, %v1237
      %v1240 = vunpack.c.l.s4 1983009808
      %v1241 = vunpack.c.0.s8 %v1240
      %v1242 = vlaneseq
      %v1243 = vshrl.u32 %v1242, 7
      %v1244 = vsub.s32 %v1241, %v1243
      %v1245 = vrot.slane %v1231, %v1244
      %v1246 = vcombine.high %v1238, %v1238
      %1247 = vrot.lane.b32.xlu0 %v1238, 90
      %v1248 = vpop.permute.xlu0 %1247
      %1249 = vrot.lane.b32.xlu0 %v1246, 90
      %v1250 = vpop.permute.xlu0 %1249
      %1251 = vrot.lane.b32.xlu0 %v1245, 90
      %v1252 = vpop.permute.xlu0 %1251
      %vm1253 = vcmask 736256
      %v1254 = vsel %vm1253, %v1248, %v1250
      %v1255 = vsel %vm1253, %v1250, %v1252
      %v1257 = vsel %vm289, %v1229, 0
      %v1260 = vsel %vm293, %v1254, 0
      %v1263 = vsel %vm293, %v1255, 0
      %v1266 = vsel %vm293, %v1252, 0
      %1268 = vmatprep.subr.bf16.mxu0 %v1263
      %1269 = vmatpush1.bf16.msra.mxu0 %v1260
      %1270 = vmatprep.subr.bf16.mxu0 0
      %1271 = vmatpush1.bf16.msra.mxu0 0
      %1272 = vmatprep.subr.bf16.mxu0 0
      %1273 = vmatpush1.bf16.msra.mxu0 0
      %1274 = vmatprep.subr.bf16.mxu0 0
      %1275 = vmatpush1.bf16.msra.mxu0 0
      %1276 = vmatprep.subr.bf16.mxu0 0
      %1277 = vmatpush1.bf16.msra.mxu0 0
      %1278 = vmatprep.subr.bf16.mxu0 0
      %1279 = vmatpush1.bf16.msra.mxu0 0
      %1280 = vmatprep.subr.bf16.mxu0 0
      %1281 = vmatpush1.bf16.msra.mxu0 0
      %1282 = vmatprep.subr.bf16.mxu0 0
      %1283 = vmatpush1.bf16.msra.mxu0 0
      %1284 = vmatprep.subr.bf16.mxu0 0
      %1285 = vmatpush1.bf16.msra.mxu0 0
      %1286 = vmatprep.subr.bf16.mxu0 0
      %1287 = vmatpush1.bf16.msra.mxu0 0
      %1288 = vmatprep.subr.bf16.mxu0 0
      %1289 = vmatpush1.bf16.msra.mxu0 0
      %1290 = vmatprep.subr.bf16.mxu0 0
      %1291 = vmatpush1.bf16.msra.mxu0 0
      %1292 = vmatprep.subr.bf16.mxu0 0
      %1293 = vmatpush1.bf16.msra.mxu0 0
      %1294 = vmatprep.subr.bf16.mxu0 0
      %1295 = vmatpush1.bf16.msra.mxu0 0
      %1296 = vmatprep.subr.bf16.mxu0 0
      %1297 = vmatpush1.bf16.msra.mxu0 0
      %1298 = vmatprep.subr.bf16.mxu0 0
      %1299 = vmatpush1.bf16.msra.mxu0 0
      %1300 = vmatprep.mubr.bf16.mxu0 0
      %1301 = vmatmul.mubr.bf16.gmra.mrb[0].mxu0 %v1257
      %v1302 = vpop.f32.mrb[0].mxu0
      %v1303 = vadd.f32 0.0, %v1302
      %v1304 = vpop.f32.mrb[0].mxu0
      %v1305 = vadd.f32 0.0, %v1304
      %v1306 = vpop.f32.mrb[0].mxu0
      %v1307 = vpop.f32.mrb[0].mxu0
      %1308 = vdwg.mxu0
      %1309 = vmatprep.subr.bf16.mxu0 0
      %1310 = vmatpush1.bf16.msra.mxu0 %v1266
      %1311 = vmatprep.subr.bf16.mxu0 0
      %1312 = vmatpush1.bf16.msra.mxu0 0
      %1313 = vmatprep.subr.bf16.mxu0 0
      %1314 = vmatpush1.bf16.msra.mxu0 0
      %1315 = vmatprep.subr.bf16.mxu0 0
      %1316 = vmatpush1.bf16.msra.mxu0 0
      %1317 = vmatprep.subr.bf16.mxu0 0
      %1318 = vmatpush1.bf16.msra.mxu0 0
      %1319 = vmatprep.subr.bf16.mxu0 0
      %1320 = vmatpush1.bf16.msra.mxu0 0
      %1321 = vmatprep.subr.bf16.mxu0 0
      %1322 = vmatpush1.bf16.msra.mxu0 0
      %1323 = vmatprep.subr.bf16.mxu0 0
      %1324 = vmatpush1.bf16.msra.mxu0 0
      %1325 = vmatprep.subr.bf16.mxu0 0
      %1326 = vmatpush1.bf16.msra.mxu0 0
      %1327 = vmatprep.subr.bf16.mxu0 0
      %1328 = vmatpush1.bf16.msra.mxu0 0
      %1329 = vmatprep.subr.bf16.mxu0 0
      %1330 = vmatpush1.bf16.msra.mxu0 0
      %1331 = vmatprep.subr.bf16.mxu0 0
      %1332 = vmatpush1.bf16.msra.mxu0 0
      %1333 = vmatprep.subr.bf16.mxu0 0
      %1334 = vmatpush1.bf16.msra.mxu0 0
      %1335 = vmatprep.subr.bf16.mxu0 0
      %1336 = vmatpush1.bf16.msra.mxu0 0
      %1337 = vmatprep.subr.bf16.mxu0 0
      %1338 = vmatpush1.bf16.msra.mxu0 0
      %1339 = vmatprep.subr.bf16.mxu0 0
      %1340 = vmatpush1.bf16.msra.mxu0 0
      %1341 = vmatprep.mubr.bf16.mxu0 0
      %1342 = vmatmul.mubr.bf16.gmra.mrb[0].mxu0 %v1257
      %v1343 = vpop.f32.mrb[0].mxu0
      %v1344 = vadd.f32 0.0, %v1343
      %v1345 = vpop.f32.mrb[0].mxu0
      %v1346 = vpop.f32.mrb[0].mxu0
      %v1347 = vpop.f32.mrb[0].mxu0
      %1348 = vdwg.mxu0
      %v1349 = vadd.f32 %v1224, %v1303
      %v1350 = vadd.f32 %v1225, %v1305
      %v1351 = vadd.f32 %v1226, %v1344
      %v1352 = vld [vmem:[%s235] sm:$0xff]
      %1354 = vset.pattern.permute.xlu0 0
      %1355 = vperm.xlu0 %1354, %v1352
      %v1356 = vpop.permute.xlu0 %1355
      %v1358 = vadd.f32 %v1349, %v1356
      %v1359 = vadd.f32 %v1350, %v1356
      %v1360 = vadd.f32 %v1351, %v1356
      %1361 = vst [vmem:[%s257] sm:$0xff] %v1358
      %1362 = vst [vmem:[%s257 + $0x8] sm:$0xff] %v1359
      %vm1363 = vcmask 261120
      %1364 = vst.msk [vmem:[%s257 + $0x10] sm:$0xff] %vm1363, %v1360
      %p1365 = scmp.lt.s32.totalorder %s19, 1
      %s1366 = scalar_select %p1365, %s19, 1
      %p1367 = scmp.lt.s32.totalorder %s21, 0
      %s1368 = scalar_select %p1367, %s21, 0
      %p1369 = scmp.lt.s32.totalorder %s20, 0
      %s1370 = scalar_select %p1369, %s20, 0
      %s1371 = smul.addr %s1370, 3
      %s1372 = smul.addr %s1368, 3
      %s1373 = sadd.s32 %s1371, %s1372
      %s1374 = smul.addr %s1366, 3
      %s1375 = sadd.s32 %s1373, %s1374
      %s1376 = smul.addr %s1375, 8
      %s1377 = scalar_lea.vmem %s3, %s1376
      // Predicated region
      $region33: #{conv2d_pallas.1} parent=31 // pred_check
        %p1378 = pneg %p135
      $region34: #{conv2d_pallas.1} parent=31 // pred_check_branch
        %1380 = sbr.rel (%p1378) target = $region36
      $region35: #{conv2d_pallas.1} parent=31 // pred_region
        _
      $region36: #{conv2d_pallas.1} parent=31 // pred_fallthru
        _
    $region32: #{conv2d_pallas.1} parent=5 // pred_fallthru
      _
    %p1381 = scmp.le.s32.totalorder 2, %s9
    // Predicated region
    $region37: #{conv2d_pallas.1} parent=5 // pred_check
      %p1382 = pneg %p1381
    $region38: #{conv2d_pallas.1} parent=5 // pred_check_branch
      %1384 = sbr.rel (%p1382) target = $region40
    $region39: #{conv2d_pallas.1} parent=5 // pred_region
      %s1385 = ssub.s32 %s9, 2
      // Predicated region
      $region41: #{conv2d_pallas.1} parent=39 // pred_check
        %p1386 = pneg %p141
      $region42: #{conv2d_pallas.1} parent=39 // pred_check_branch
        %1388 = sbr.rel (%p1386) target = $region44
      $region43: #{conv2d_pallas.1} parent=39 // pred_region
        %p1389 = scmp.lt.s32.totalorder %s22, 1
        %s1390 = scalar_select %p1389, %s22, 1
        %p1391 = scmp.lt.s32.totalorder %s24, 0
        %s1392 = scalar_select %p1391, %s24, 0
        %p1393 = scmp.lt.s32.totalorder %s23, 0
        %s1394 = scalar_select %p1393, %s23, 0
        %s1395 = smul.addr %s1394, 3
        %s1396 = smul.addr %s1392, 3
        %s1397 = sadd.s32 %s1395, %s1396
        %s1398 = smul.addr %s1390, 3
        %s1399 = sadd.s32 %s1397, %s1398
        %s1400 = smul.addr %s1399, 8
        %s1401 = scalar_lea.vmem %s3, %s1400
      $region44: #{conv2d_pallas.1} parent=39 // pred_fallthru
        _
    $region40: #{conv2d_pallas.1} parent=5 // pred_fallthru
      _
  $region6: #{conv2d_pallas.1} parent=0 // loop_footer
    %s13 = sadd.s32 1, %s9
  $region7: #{conv2d_pallas.1} parent=0 // loop_footer_branch
    %8 = sbr.rel target = $region3
  $region8: #{conv2d_pallas.1} parent=0 // loop_exit
    _

</llo_original>
